<compile_context>
chip_gen: v6e
topology: v6e:2x2x1
jax: 0.10.0
libtpu: 0.0.40
codegen_flags: <defaults>
</compile_context>

<pallas_src>
import math

import jax
import jax.numpy as jnp
import numpy as np
from jax.experimental import pallas as pl
from jax.experimental.pallas import tpu as pltpu

V = 25    # number of heads / joints
D = 128   # per-head feature width


# ------------------------------- Pallas kernel -------------------------------

def _last_pred_kernel(x_ref, w_ref, b_ref, o_ref):
    """One grid step over TB rows.

    Blocks: x = (TB, V*D) flattened rows, w = (V*D, V) block-diagonal weights,
            b = (1, V), out = (TB, V).
    out[n, v] = sum_d x[n, v*D + d] * w[v*D + d, v] + b[v]
    """
    x = x_ref[...].astype(jnp.float32)                       # (TB, V*D)
    acc = jnp.dot(x, w_ref[...],
                  preferred_element_type=jnp.float32)        # MXU -> (TB, V)
    o_ref[...] = (acc + b_ref[...].astype(jnp.float32)).astype(o_ref.dtype)


# ----------------------------- pallas_call wrapper ---------------------------

def _choose_tb(n, tb_default=512):
    """Fixed large tile; small-N fallback is a single sublane-aligned block."""
    if n >= tb_default:
        return tb_default
    return max(8, ((n + 7) // 8) * 8)


def last_pred_pallas(x, w, b):
    """x: (..., V, D) with V=25, D=128.
    w: (V, D) stacked PyTorch Linear weights (each original weight is (1, D)).
    b: (V,) stacked biases.  Returns (..., V)."""
    *lead, v_dim, d_dim = x.shape
    assert (v_dim, d_dim) == (V, D)
    N = math.prod(lead)

    # Flatten leading dims to rows and trailing (V, D) to one 3200-lane axis.
    x2 = x.reshape(N, V * D)

    # Fixed tile + cdiv grid; zero-pad rows so every block is full.
    TB = _choose_tb(N)
    Np = pl.cdiv(N, TB) * TB
    if Np != N:
        x2 = jnp.pad(x2, ((0, Np - N), (0, 0)))
    grid = (Np // TB,)

    # Block-diagonal weight: wbd[v*D + d, u] = w[v, d] if u == v else 0.
    wf = w.astype(jnp.float32)
    eye = jnp.eye(V, dtype=jnp.float32)
    wbd = (wf[:, :, None] * eye[:, None, :]).reshape(V * D, V)   # (3200, 25)
    b2 = b.astype(jnp.float32).reshape(1, V)

    cost = pl.CostEstimate(
        flops=2 * Np * V * D,
        transcendentals=0,
        bytes_accessed=Np * V * D * x.dtype.itemsize + Np * V * x.dtype.itemsize
        + V * D * 4 + V * 4,
    )

    out = pl.pallas_call(
        _last_pred_kernel,
        out_shape=jax.ShapeDtypeStruct((Np, V), x.dtype),
        grid=grid,
        in_specs=[
            pl.BlockSpec((TB, V * D), lambda i: (i, 0)),   # streaming rows
            pl.BlockSpec((V * D, V), lambda i: (0, 0)),    # resident weights
            pl.BlockSpec((1, V), lambda i: (0, 0)),        # resident biases
        ],
        out_specs=pl.BlockSpec((TB, V), lambda i: (i, 0)),
        compiler_params=pltpu.CompilerParams(
            dimension_semantics=("parallel",),
            vmem_limit_bytes=48 * 1024 * 1024,
        ),
        cost_estimate=cost,
    )(x2, wbd, b2)

    return out[:N].reshape(*lead, V)


# --------------------------- pure-JAX reference ------------------------------

def last_pred_ref(x, w, b):
    return jnp.einsum("...vd,vd->...v", x, w) + b


# ----------------------------------- main ------------------------------------

if __name__ == "__main__":
    B, C, T = 2, 4, 8

    key = jax.random.PRNGKey(0)
    kx, kw, kb = jax.random.split(key, 3)
    x = jax.random.normal(kx, (B, C, T, V, D), jnp.float32)
    # Stacked equivalents of 25 x nn.Linear(128, 1): weight (V, D), bias (V,).
    w = 0.1 * jax.random.normal(kw, (V, D), jnp.float32)
    b = 0.1 * jax.random.normal(kb, (V,), jnp.float32)

    fwd = jax.jit(last_pred_pallas)
    out = fwd(x, w, b)
    jax.block_until_ready(out)
    assert out.shape == (B, C, T, V)

    out_ref = last_pred_ref(x, w, b)
    np.testing.assert_allclose(np.asarray(out), np.asarray(out_ref),
                               rtol=1e-4, atol=1e-4)

    print("KERNEL_OK")
</pallas_src>

<mosaic_0001>
module attributes {stable_mosaic.version = 11 : i64} {
  func.func @_last_pred_kernel(%arg0: i32, %arg1: memref<64x3200xf32, #tpu.memory_space<vmem>>, %arg2: memref<3200x25xf32, #tpu.memory_space<vmem>>, %arg3: memref<1x25xf32, #tpu.memory_space<vmem>>, %arg4: memref<64x25xf32, #tpu.memory_space<vmem>>) attributes {dimension_semantics = [#tpu.dimension_semantics<parallel>], iteration_bounds = array<i64: 1>, scalar_prefetch = 0 : i64, scratch_operands = 0 : i64, tpu.core_type = #tpu.core_type<tc>, window_params = [{transform_indices = @transform_0, window_bounds = array<i64: 64, 3200>}, {pipeline_mode = #tpu.pipeline_mode<synchronous>, transform_indices = @transform_1, window_bounds = array<i64: 3200, 25>}, {pipeline_mode = #tpu.pipeline_mode<synchronous>, transform_indices = @transform_2, window_bounds = array<i64: 1, 25>}, {transform_indices = @transform_3, window_bounds = array<i64: 64, 25>}]} {
    %c0 = arith.constant 0 : index
    %c0_0 = arith.constant 0 : index
    %0 = vector.load %arg1[%c0, %c0_0] : memref<64x3200xf32, #tpu.memory_space<vmem>>, vector<64x3200xf32>
    %c0_1 = arith.constant 0 : index
    %c0_2 = arith.constant 0 : index
    %1 = vector.load %arg2[%c0_1, %c0_2] : memref<3200x25xf32, #tpu.memory_space<vmem>>, vector<3200x25xf32>
    %cst = arith.constant dense<0.000000e+00> : vector<64x25xf32>
    %2 = tpu.matmul %0, %1, %cst {dimension_numbers = #tpu.dot_dimension_numbers<[1], [0], [0], [1], [0, 0, 1, 1], [], []>} : vector<64x3200xf32>, vector<3200x25xf32>, vector<64x25xf32> -> vector<64x25xf32>
    %c0_3 = arith.constant 0 : index
    %c0_4 = arith.constant 0 : index
    %3 = vector.load %arg3[%c0_3, %c0_4] : memref<1x25xf32, #tpu.memory_space<vmem>>, vector<1x25xf32>
    %4 = vector.broadcast %3 : vector<1x25xf32> to vector<64x25xf32>
    %5 = arith.addf %2, %4 : vector<64x25xf32>
    %c0_5 = arith.constant 0 : index
    %c0_6 = arith.constant 0 : index
    %6 = vector.load %arg4[%c0_5, %c0_6] : memref<64x25xf32, #tpu.memory_space<vmem>>, vector<64x25xf32>
    tpu.vector_store %arg4[%c0_5, %c0_6], %5 {strides = array<i32>} : memref<64x25xf32, #tpu.memory_space<vmem>>, vector<64x25xf32>,
    return
  }
  func.func @transform_0(%arg0: i32) -> (i32, i32) {
    %c0_i32 = arith.constant 0 : i32
    %c0_i32_0 = arith.constant 0 : i32
    return %arg0, %c0_i32 : i32, i32
  }
  func.func @transform_1(%arg0: i32) -> (i32, i32) {
    %c0_i32 = arith.constant 0 : i32
    %c0_i32_0 = arith.constant 0 : i32
    %c0_i32_1 = arith.constant 0 : i32
    return %c0_i32, %c0_i32_0 : i32, i32
  }
  func.func @transform_2(%arg0: i32) -> (i32, i32) {
    %c0_i32 = arith.constant 0 : i32
    %c0_i32_0 = arith.constant 0 : i32
    %c0_i32_1 = arith.constant 0 : i32
    return %c0_i32, %c0_i32_0 : i32, i32
  }
  func.func @transform_3(%arg0: i32) -> (i32, i32) {
    %c0_i32 = arith.constant 0 : i32
    %c0_i32_0 = arith.constant 0 : i32
    return %arg0, %c0_i32 : i32, i32
  }
}

</mosaic_0001>

<llo_original>
// kernel: last_pred_pallas.1
$region0: #{last_pred_pallas.1}
  #allocation0 [shape = 'u32[]', space=smem, size = 0x4, offset = 0x4, fixed_abs, tag = 'smem constant byte address 0x4 - core index']
  #allocation1 [shape = 'u32[144,128]{1,0:T(1,128)}', space=vmem, size = 0x12000, scoped, tag = 'internal scratch']
  %s0 = inlined_call_operand.vmem [shape: f32[64,3200], index: 0, kind: input, shape index: {}]
  %s1 = inlined_call_operand.vmem [shape: f32[3200,25], index: 1, kind: input, shape index: {}]
  %s2 = inlined_call_operand.vmem [shape: f32[1,25], index: 2, kind: input, shape index: {}]
  %s3 = inlined_call_operand.hbm [shape: f32[64,25], index: 3, kind: output, shape index: {}]
  %s4 = sld [smem:[#allocation0]]
  $region22: #{last_pred_pallas.1} parent=0
    _
  %s6 = ssub.s32 1, %s4
  %s7 = scalar_select 0, %s6, %s4
  $region1: #{last_pred_pallas.1} parent=0
    #allocation2 [shape = 'u8[32768]{0}', space=vmem, size = 0x8000, scoped, tag = 'output window, operand 0, single buffered']
    #allocation3 [shape = 's32[1]{0}', space=sflag, size = 0x4, scoped, tag = 'scoped memory for last_pred_pallas.1']
    %8 = vsyncpa [#allocation3], 0
    // Predicated region
    $region2: #{last_pred_pallas.1} parent=1 // pred_check
      _
    $region3: #{last_pred_pallas.1} parent=1 // pred_check_branch
      %10 = sbr.rel (0) target = $region5
    $region4: #{last_pred_pallas.1} parent=1 // pred_region
      _
    $region5: #{last_pred_pallas.1} parent=1 // pred_fallthru
      _
    // Predicated region
    $region6: #{last_pred_pallas.1} parent=1 // pred_check
      _
    $region7: #{last_pred_pallas.1} parent=1 // pred_check_branch
      %12 = sbr.rel (0) target = $region9
    $region8: #{last_pred_pallas.1} parent=1 // pred_region
      _
    $region9: #{last_pred_pallas.1} parent=1 // pred_fallthru
      _
    // Predicated region
    $region10: #{last_pred_pallas.1} parent=1 // pred_check
      _
    $region11: #{last_pred_pallas.1} parent=1 // pred_check_branch
      %14 = sbr.rel (0) target = $region13
    $region12: #{last_pred_pallas.1} parent=1 // pred_region
      _
    $region13: #{last_pred_pallas.1} parent=1 // pred_fallthru
      _
    %v15 = vld [vmem:[%s0] sm:$0xff]
    %v16 = vld [vmem:[%s0 + $0x8] sm:$0xff]
    %v17 = vld [vmem:[%s0 + $0x10] sm:$0xff]
    %v18 = vld [vmem:[%s0 + $0x18] sm:$0xff]
    %v19 = vld [vmem:[%s0 + $0x20] sm:$0xff]
    %v20 = vld [vmem:[%s0 + $0x28] sm:$0xff]
    %v21 = vld [vmem:[%s0 + $0x30] sm:$0xff]
    %v22 = vld [vmem:[%s0 + $0x38] sm:$0xff]
    %v23 = vld [vmem:[%s0 + $0x40] sm:$0xff]
    %v24 = vld [vmem:[%s0 + $0x48] sm:$0xff]
    %v25 = vld [vmem:[%s0 + $0x50] sm:$0xff]
    %v26 = vld [vmem:[%s0 + $0x58] sm:$0xff]
    %v27 = vld [vmem:[%s0 + $0x60] sm:$0xff]
    %v28 = vld [vmem:[%s0 + $0x68] sm:$0xff]
    %v29 = vld [vmem:[%s0 + $0x70] sm:$0xff]
    %v30 = vld [vmem:[%s0 + $0x78] sm:$0xff]
    %v31 = vld [vmem:[%s0 + $0x80] sm:$0xff]
    %v32 = vld [vmem:[%s0 + $0x88] sm:$0xff]
    %v33 = vld [vmem:[%s0 + $0x90] sm:$0xff]
    %v34 = vld [vmem:[%s0 + $0x98] sm:$0xff]
    %v35 = vld [vmem:[%s0 + $0xa0] sm:$0xff]
    %v36 = vld [vmem:[%s0 + $0xa8] sm:$0xff]
    %v37 = vld [vmem:[%s0 + $0xb0] sm:$0xff]
    %v38 = vld [vmem:[%s0 + $0xb8] sm:$0xff]
    %v39 = vld [vmem:[%s0 + $0xc0] sm:$0xff]
    %v40 = vld [vmem:[%s0 + $0xc8] sm:$0xff]
    %v41 = vld [vmem:[%s0 + $0xd0] sm:$0xff]
    %v42 = vld [vmem:[%s0 + $0xd8] sm:$0xff]
    %v43 = vld [vmem:[%s0 + $0xe0] sm:$0xff]
    %v44 = vld [vmem:[%s0 + $0xe8] sm:$0xff]
    %v45 = vld [vmem:[%s0 + $0xf0] sm:$0xff]
    %v46 = vld [vmem:[%s0 + $0xf8] sm:$0xff]
    %v47 = vld [vmem:[%s0 + $0x100] sm:$0xff]
    %v48 = vld [vmem:[%s0 + $0x108] sm:$0xff]
    %v49 = vld [vmem:[%s0 + $0x110] sm:$0xff]
    %v50 = vld [vmem:[%s0 + $0x118] sm:$0xff]
    %v51 = vld [vmem:[%s0 + $0x120] sm:$0xff]
    %v52 = vld [vmem:[%s0 + $0x128] sm:$0xff]
    %v53 = vld [vmem:[%s0 + $0x130] sm:$0xff]
    %v54 = vld [vmem:[%s0 + $0x138] sm:$0xff]
    %v55 = vld [vmem:[%s0 + $0x140] sm:$0xff]
    %v56 = vld [vmem:[%s0 + $0x148] sm:$0xff]
    %v57 = vld [vmem:[%s0 + $0x150] sm:$0xff]
    %v58 = vld [vmem:[%s0 + $0x158] sm:$0xff]
    %v59 = vld [vmem:[%s0 + $0x160] sm:$0xff]
    %v60 = vld [vmem:[%s0 + $0x168] sm:$0xff]
    %v61 = vld [vmem:[%s0 + $0x170] sm:$0xff]
    %v62 = vld [vmem:[%s0 + $0x178] sm:$0xff]
    %v63 = vld [vmem:[%s0 + $0x180] sm:$0xff]
    %v64 = vld [vmem:[%s0 + $0x188] sm:$0xff]
    %v65 = vld [vmem:[%s0 + $0x190] sm:$0xff]
    %v66 = vld [vmem:[%s0 + $0x198] sm:$0xff]
    %v67 = vld [vmem:[%s0 + $0x1a0] sm:$0xff]
    %v68 = vld [vmem:[%s0 + $0x1a8] sm:$0xff]
    %v69 = vld [vmem:[%s0 + $0x1b0] sm:$0xff]
    %v70 = vld [vmem:[%s0 + $0x1b8] sm:$0xff]
    %v71 = vld [vmem:[%s0 + $0x1c0] sm:$0xff]
    %v72 = vld [vmem:[%s0 + $0x1c8] sm:$0xff]
    %v73 = vld [vmem:[%s0 + $0x1d0] sm:$0xff]
    %v74 = vld [vmem:[%s0 + $0x1d8] sm:$0xff]
    %v75 = vld [vmem:[%s0 + $0x1e0] sm:$0xff]
    %v76 = vld [vmem:[%s0 + $0x1e8] sm:$0xff]
    %v77 = vld [vmem:[%s0 + $0x1f0] sm:$0xff]
    %v78 = vld [vmem:[%s0 + $0x1f8] sm:$0xff]
    %v79 = vld [vmem:[%s0 + $0x200] sm:$0xff]
    %v80 = vld [vmem:[%s0 + $0x208] sm:$0xff]
    %v81 = vld [vmem:[%s0 + $0x210] sm:$0xff]
    %v82 = vld [vmem:[%s0 + $0x218] sm:$0xff]
    %v83 = vld [vmem:[%s0 + $0x220] sm:$0xff]
    %v84 = vld [vmem:[%s0 + $0x228] sm:$0xff]
    %v85 = vld [vmem:[%s0 + $0x230] sm:$0xff]
    %v86 = vld [vmem:[%s0 + $0x238] sm:$0xff]
    %v87 = vld [vmem:[%s0 + $0x240] sm:$0xff]
    %v88 = vld [vmem:[%s0 + $0x248] sm:$0xff]
    %v89 = vld [vmem:[%s0 + $0x250] sm:$0xff]
    %v90 = vld [vmem:[%s0 + $0x258] sm:$0xff]
    %v91 = vld [vmem:[%s0 + $0x260] sm:$0xff]
    %v92 = vld [vmem:[%s0 + $0x268] sm:$0xff]
    %v93 = vld [vmem:[%s0 + $0x270] sm:$0xff]
    %v94 = vld [vmem:[%s0 + $0x278] sm:$0xff]
    %v95 = vld [vmem:[%s0 + $0x280] sm:$0xff]
    %v96 = vld [vmem:[%s0 + $0x288] sm:$0xff]
    %v97 = vld [vmem:[%s0 + $0x290] sm:$0xff]
    %v98 = vld [vmem:[%s0 + $0x298] sm:$0xff]
    %v99 = vld [vmem:[%s0 + $0x2a0] sm:$0xff]
    %v100 = vld [vmem:[%s0 + $0x2a8] sm:$0xff]
    %v101 = vld [vmem:[%s0 + $0x2b0] sm:$0xff]
    %v102 = vld [vmem:[%s0 + $0x2b8] sm:$0xff]
    %v103 = vld [vmem:[%s0 + $0x2c0] sm:$0xff]
    %v104 = vld [vmem:[%s0 + $0x2c8] sm:$0xff]
    %v105 = vld [vmem:[%s0 + $0x2d0] sm:$0xff]
    %v106 = vld [vmem:[%s0 + $0x2d8] sm:$0xff]
    %v107 = vld [vmem:[%s0 + $0x2e0] sm:$0xff]
    %v108 = vld [vmem:[%s0 + $0x2e8] sm:$0xff]
    %v109 = vld [vmem:[%s0 + $0x2f0] sm:$0xff]
    %v110 = vld [vmem:[%s0 + $0x2f8] sm:$0xff]
    %v111 = vld [vmem:[%s0 + $0x300] sm:$0xff]
    %v112 = vld [vmem:[%s0 + $0x308] sm:$0xff]
    %v113 = vld [vmem:[%s0 + $0x310] sm:$0xff]
    %v114 = vld [vmem:[%s0 + $0x318] sm:$0xff]
    %v115 = vld [vmem:[%s0 + $0x320] sm:$0xff]
    %v116 = vld [vmem:[%s0 + $0x328] sm:$0xff]
    %v117 = vld [vmem:[%s0 + $0x330] sm:$0xff]
    %v118 = vld [vmem:[%s0 + $0x338] sm:$0xff]
    %v119 = vld [vmem:[%s0 + $0x340] sm:$0xff]
    %v120 = vld [vmem:[%s0 + $0x348] sm:$0xff]
    %v121 = vld [vmem:[%s0 + $0x350] sm:$0xff]
    %v122 = vld [vmem:[%s0 + $0x358] sm:$0xff]
    %v123 = vld [vmem:[%s0 + $0x360] sm:$0xff]
    %v124 = vld [vmem:[%s0 + $0x368] sm:$0xff]
    %v125 = vld [vmem:[%s0 + $0x370] sm:$0xff]
    %v126 = vld [vmem:[%s0 + $0x378] sm:$0xff]
    %v127 = vld [vmem:[%s0 + $0x380] sm:$0xff]
    %v128 = vld [vmem:[%s0 + $0x388] sm:$0xff]
    %v129 = vld [vmem:[%s0 + $0x390] sm:$0xff]
    %v130 = vld [vmem:[%s0 + $0x398] sm:$0xff]
    %v131 = vld [vmem:[%s0 + $0x3a0] sm:$0xff]
    %v132 = vld [vmem:[%s0 + $0x3a8] sm:$0xff]
    %v133 = vld [vmem:[%s0 + $0x3b0] sm:$0xff]
    %v134 = vld [vmem:[%s0 + $0x3b8] sm:$0xff]
    %v135 = vld [vmem:[%s0 + $0x3c0] sm:$0xff]
    %v136 = vld [vmem:[%s0 + $0x3c8] sm:$0xff]
    %v137 = vld [vmem:[%s0 + $0x3d0] sm:$0xff]
    %v138 = vld [vmem:[%s0 + $0x3d8] sm:$0xff]
    %v139 = vld [vmem:[%s0 + $0x3e0] sm:$0xff]
    %v140 = vld [vmem:[%s0 + $0x3e8] sm:$0xff]
    %v141 = vld [vmem:[%s0 + $0x3f0] sm:$0xff]
    %v142 = vld [vmem:[%s0 + $0x3f8] sm:$0xff]
    %v143 = vld [vmem:[%s0 + $0x400] sm:$0xff]
    %v144 = vld [vmem:[%s0 + $0x408] sm:$0xff]
    %v145 = vld [vmem:[%s0 + $0x410] sm:$0xff]
    %v146 = vld [vmem:[%s0 + $0x418] sm:$0xff]
    %v147 = vld [vmem:[%s0 + $0x420] sm:$0xff]
    %v148 = vld [vmem:[%s0 + $0x428] sm:$0xff]
    %v149 = vld [vmem:[%s0 + $0x430] sm:$0xff]
    %v150 = vld [vmem:[%s0 + $0x438] sm:$0xff]
    %v151 = vld [vmem:[%s0 + $0x440] sm:$0xff]
    %v152 = vld [vmem:[%s0 + $0x448] sm:$0xff]
    %v153 = vld [vmem:[%s0 + $0x450] sm:$0xff]
    %v154 = vld [vmem:[%s0 + $0x458] sm:$0xff]
    %v155 = vld [vmem:[%s0 + $0x460] sm:$0xff]
    %v156 = vld [vmem:[%s0 + $0x468] sm:$0xff]
    %v157 = vld [vmem:[%s0 + $0x470] sm:$0xff]
    %v158 = vld [vmem:[%s0 + $0x478] sm:$0xff]
    %v159 = vld [vmem:[%s0 + $0x480] sm:$0xff]
    %v160 = vld [vmem:[%s0 + $0x488] sm:$0xff]
    %v161 = vld [vmem:[%s0 + $0x490] sm:$0xff]
    %v162 = vld [vmem:[%s0 + $0x498] sm:$0xff]
    %v163 = vld [vmem:[%s0 + $0x4a0] sm:$0xff]
    %v164 = vld [vmem:[%s0 + $0x4a8] sm:$0xff]
    %v165 = vld [vmem:[%s0 + $0x4b0] sm:$0xff]
    %v166 = vld [vmem:[%s0 + $0x4b8] sm:$0xff]
    %v167 = vld [vmem:[%s0 + $0x4c0] sm:$0xff]
    %v168 = vld [vmem:[%s0 + $0x4c8] sm:$0xff]
    %v169 = vld [vmem:[%s0 + $0x4d0] sm:$0xff]
    %v170 = vld [vmem:[%s0 + $0x4d8] sm:$0xff]
    %v171 = vld [vmem:[%s0 + $0x4e0] sm:$0xff]
    %v172 = vld [vmem:[%s0 + $0x4e8] sm:$0xff]
    %v173 = vld [vmem:[%s0 + $0x4f0] sm:$0xff]
    %v174 = vld [vmem:[%s0 + $0x4f8] sm:$0xff]
    %v175 = vld [vmem:[%s0 + $0x500] sm:$0xff]
    %v176 = vld [vmem:[%s0 + $0x508] sm:$0xff]
    %v177 = vld [vmem:[%s0 + $0x510] sm:$0xff]
    %v178 = vld [vmem:[%s0 + $0x518] sm:$0xff]
    %v179 = vld [vmem:[%s0 + $0x520] sm:$0xff]
    %v180 = vld [vmem:[%s0 + $0x528] sm:$0xff]
    %v181 = vld [vmem:[%s0 + $0x530] sm:$0xff]
    %v182 = vld [vmem:[%s0 + $0x538] sm:$0xff]
    %v183 = vld [vmem:[%s0 + $0x540] sm:$0xff]
    %v184 = vld [vmem:[%s0 + $0x548] sm:$0xff]
    %v185 = vld [vmem:[%s0 + $0x550] sm:$0xff]
    %v186 = vld [vmem:[%s0 + $0x558] sm:$0xff]
    %v187 = vld [vmem:[%s0 + $0x560] sm:$0xff]
    %v188 = vld [vmem:[%s0 + $0x568] sm:$0xff]
    %v189 = vld [vmem:[%s0 + $0x570] sm:$0xff]
    %v190 = vld [vmem:[%s0 + $0x578] sm:$0xff]
    %v191 = vld [vmem:[%s0 + $0x580] sm:$0xff]
    %v192 = vld [vmem:[%s0 + $0x588] sm:$0xff]
    %v193 = vld [vmem:[%s0 + $0x590] sm:$0xff]
    %v194 = vld [vmem:[%s0 + $0x598] sm:$0xff]
    %v195 = vld [vmem:[%s0 + $0x5a0] sm:$0xff]
    %v196 = vld [vmem:[%s0 + $0x5a8] sm:$0xff]
    %v197 = vld [vmem:[%s0 + $0x5b0] sm:$0xff]
    %v198 = vld [vmem:[%s0 + $0x5b8] sm:$0xff]
    %v199 = vld [vmem:[%s0 + $0x5c0] sm:$0xff]
    %v200 = vld [vmem:[%s0 + $0x5c8] sm:$0xff]
    %v201 = vld [vmem:[%s0 + $0x5d0] sm:$0xff]
    %v202 = vld [vmem:[%s0 + $0x5d8] sm:$0xff]
    %v203 = vld [vmem:[%s0 + $0x5e0] sm:$0xff]
    %v204 = vld [vmem:[%s0 + $0x5e8] sm:$0xff]
    %v205 = vld [vmem:[%s0 + $0x5f0] sm:$0xff]
    %v206 = vld [vmem:[%s0 + $0x5f8] sm:$0xff]
    %v207 = vld [vmem:[%s0 + $0x600] sm:$0xff]
    %v208 = vld [vmem:[%s0 + $0x608] sm:$0xff]
    %v209 = vld [vmem:[%s0 + $0x610] sm:$0xff]
    %v210 = vld [vmem:[%s0 + $0x618] sm:$0xff]
    %v211 = vld [vmem:[%s0 + $0x620] sm:$0xff]
    %v212 = vld [vmem:[%s0 + $0x628] sm:$0xff]
    %v213 = vld [vmem:[%s0 + $0x630] sm:$0xff]
    %v214 = vld [vmem:[%s0 + $0x638] sm:$0xff]
    %v215 = vld [vmem:[%s1] sm:$0xff]
    %v216 = vld [vmem:[%s1 + $0x8] sm:$0xff]
    %v217 = vld [vmem:[%s1 + $0x10] sm:$0xff]
    %v218 = vld [vmem:[%s1 + $0x18] sm:$0xff]
    %v219 = vld [vmem:[%s1 + $0x20] sm:$0xff]
    %v220 = vld [vmem:[%s1 + $0x28] sm:$0xff]
    %v221 = vld [vmem:[%s1 + $0x30] sm:$0xff]
    %v222 = vld [vmem:[%s1 + $0x38] sm:$0xff]
    %v223 = vld [vmem:[%s1 + $0x40] sm:$0xff]
    %v224 = vld [vmem:[%s1 + $0x48] sm:$0xff]
    %v225 = vld [vmem:[%s1 + $0x50] sm:$0xff]
    %v226 = vld [vmem:[%s1 + $0x58] sm:$0xff]
    %v227 = vld [vmem:[%s1 + $0x60] sm:$0xff]
    %v228 = vld [vmem:[%s1 + $0x68] sm:$0xff]
    %v229 = vld [vmem:[%s1 + $0x70] sm:$0xff]
    %v230 = vld [vmem:[%s1 + $0x78] sm:$0xff]
    %v231 = vld [vmem:[%s1 + $0x80] sm:$0xff]
    %v232 = vld [vmem:[%s1 + $0x88] sm:$0xff]
    %v233 = vld [vmem:[%s1 + $0x90] sm:$0xff]
    %v234 = vld [vmem:[%s1 + $0x98] sm:$0xff]
    %v235 = vld [vmem:[%s1 + $0xa0] sm:$0xff]
    %v236 = vld [vmem:[%s1 + $0xa8] sm:$0xff]
    %v237 = vld [vmem:[%s1 + $0xb0] sm:$0xff]
    %v238 = vld [vmem:[%s1 + $0xb8] sm:$0xff]
    %v239 = vld [vmem:[%s1 + $0xc0] sm:$0xff]
    %v240 = vld [vmem:[%s1 + $0xc8] sm:$0xff]
    %v241 = vld [vmem:[%s1 + $0xd0] sm:$0xff]
    %v242 = vld [vmem:[%s1 + $0xd8] sm:$0xff]
    %v243 = vld [vmem:[%s1 + $0xe0] sm:$0xff]
    %v244 = vld [vmem:[%s1 + $0xe8] sm:$0xff]
    %v245 = vld [vmem:[%s1 + $0xf0] sm:$0xff]
    %v246 = vld [vmem:[%s1 + $0xf8] sm:$0xff]
    %v247 = vld [vmem:[%s1 + $0x100] sm:$0xff]
    %v248 = vld [vmem:[%s1 + $0x108] sm:$0xff]
    %v249 = vld [vmem:[%s1 + $0x110] sm:$0xff]
    %v250 = vld [vmem:[%s1 + $0x118] sm:$0xff]
    %v251 = vld [vmem:[%s1 + $0x120] sm:$0xff]
    %v252 = vld [vmem:[%s1 + $0x128] sm:$0xff]
    %v253 = vld [vmem:[%s1 + $0x130] sm:$0xff]
    %v254 = vld [vmem:[%s1 + $0x138] sm:$0xff]
    %v255 = vld [vmem:[%s1 + $0x140] sm:$0xff]
    %v256 = vld [vmem:[%s1 + $0x148] sm:$0xff]
    %v257 = vld [vmem:[%s1 + $0x150] sm:$0xff]
    %v258 = vld [vmem:[%s1 + $0x158] sm:$0xff]
    %v259 = vld [vmem:[%s1 + $0x160] sm:$0xff]
    %v260 = vld [vmem:[%s1 + $0x168] sm:$0xff]
    %v261 = vld [vmem:[%s1 + $0x170] sm:$0xff]
    %v262 = vld [vmem:[%s1 + $0x178] sm:$0xff]
    %v263 = vld [vmem:[%s1 + $0x180] sm:$0xff]
    %v264 = vld [vmem:[%s1 + $0x188] sm:$0xff]
    %v265 = vld [vmem:[%s1 + $0x190] sm:$0xff]
    %v266 = vld [vmem:[%s1 + $0x198] sm:$0xff]
    %v267 = vld [vmem:[%s1 + $0x1a0] sm:$0xff]
    %v268 = vld [vmem:[%s1 + $0x1a8] sm:$0xff]
    %v269 = vld [vmem:[%s1 + $0x1b0] sm:$0xff]
    %v270 = vld [vmem:[%s1 + $0x1b8] sm:$0xff]
    %v271 = vld [vmem:[%s1 + $0x1c0] sm:$0xff]
    %v272 = vld [vmem:[%s1 + $0x1c8] sm:$0xff]
    %v273 = vld [vmem:[%s1 + $0x1d0] sm:$0xff]
    %v274 = vld [vmem:[%s1 + $0x1d8] sm:$0xff]
    %v275 = vld [vmem:[%s1 + $0x1e0] sm:$0xff]
    %v276 = vld [vmem:[%s1 + $0x1e8] sm:$0xff]
    %v277 = vld [vmem:[%s1 + $0x1f0] sm:$0xff]
    %v278 = vld [vmem:[%s1 + $0x1f8] sm:$0xff]
    %v279 = vld [vmem:[%s1 + $0x200] sm:$0xff]
    %v280 = vld [vmem:[%s1 + $0x208] sm:$0xff]
    %v281 = vld [vmem:[%s1 + $0x210] sm:$0xff]
    %v282 = vld [vmem:[%s1 + $0x218] sm:$0xff]
    %v283 = vld [vmem:[%s1 + $0x220] sm:$0xff]
    %v284 = vld [vmem:[%s1 + $0x228] sm:$0xff]
    %v285 = vld [vmem:[%s1 + $0x230] sm:$0xff]
    %v286 = vld [vmem:[%s1 + $0x238] sm:$0xff]
    %v287 = vld [vmem:[%s1 + $0x240] sm:$0xff]
    %v288 = vld [vmem:[%s1 + $0x248] sm:$0xff]
    %v289 = vld [vmem:[%s1 + $0x250] sm:$0xff]
    %v290 = vld [vmem:[%s1 + $0x258] sm:$0xff]
    %v291 = vld [vmem:[%s1 + $0x260] sm:$0xff]
    %v292 = vld [vmem:[%s1 + $0x268] sm:$0xff]
    %v293 = vld [vmem:[%s1 + $0x270] sm:$0xff]
    %v294 = vld [vmem:[%s1 + $0x278] sm:$0xff]
    %v295 = vld [vmem:[%s1 + $0x280] sm:$0xff]
    %v296 = vld [vmem:[%s1 + $0x288] sm:$0xff]
    %v297 = vld [vmem:[%s1 + $0x290] sm:$0xff]
    %v298 = vld [vmem:[%s1 + $0x298] sm:$0xff]
    %v299 = vld [vmem:[%s1 + $0x2a0] sm:$0xff]
    %v300 = vld [vmem:[%s1 + $0x2a8] sm:$0xff]
    %v301 = vld [vmem:[%s1 + $0x2b0] sm:$0xff]
    %v302 = vld [vmem:[%s1 + $0x2b8] sm:$0xff]
    %v303 = vld [vmem:[%s1 + $0x2c0] sm:$0xff]
    %v304 = vld [vmem:[%s1 + $0x2c8] sm:$0xff]
    %v305 = vld [vmem:[%s1 + $0x2d0] sm:$0xff]
    %v306 = vld [vmem:[%s1 + $0x2d8] sm:$0xff]
    %v307 = vld [vmem:[%s1 + $0x2e0] sm:$0xff]
    %v308 = vld [vmem:[%s1 + $0x2e8] sm:$0xff]
    %v309 = vld [vmem:[%s1 + $0x2f0] sm:$0xff]
    %v310 = vld [vmem:[%s1 + $0x2f8] sm:$0xff]
    %v311 = vld [vmem:[%s1 + $0x300] sm:$0xff]
    %v312 = vld [vmem:[%s1 + $0x308] sm:$0xff]
    %v313 = vld [vmem:[%s1 + $0x310] sm:$0xff]
    %v314 = vld [vmem:[%s1 + $0x318] sm:$0xff]
    %v315 = vld [vmem:[%s1 + $0x320] sm:$0xff]
    %v316 = vld [vmem:[%s1 + $0x328] sm:$0xff]
    %v317 = vld [vmem:[%s1 + $0x330] sm:$0xff]
    %v318 = vld [vmem:[%s1 + $0x338] sm:$0xff]
    %v319 = vld [vmem:[%s1 + $0x340] sm:$0xff]
    %v320 = vld [vmem:[%s1 + $0x348] sm:$0xff]
    %v321 = vld [vmem:[%s1 + $0x350] sm:$0xff]
    %v322 = vld [vmem:[%s1 + $0x358] sm:$0xff]
    %v323 = vld [vmem:[%s1 + $0x360] sm:$0xff]
    %v324 = vld [vmem:[%s1 + $0x368] sm:$0xff]
    %v325 = vld [vmem:[%s1 + $0x370] sm:$0xff]
    %v326 = vld [vmem:[%s1 + $0x378] sm:$0xff]
    %v327 = vld [vmem:[%s1 + $0x380] sm:$0xff]
    %v328 = vld [vmem:[%s1 + $0x388] sm:$0xff]
    %v329 = vld [vmem:[%s1 + $0x390] sm:$0xff]
    %v330 = vld [vmem:[%s1 + $0x398] sm:$0xff]
    %v331 = vld [vmem:[%s1 + $0x3a0] sm:$0xff]
    %v332 = vld [vmem:[%s1 + $0x3a8] sm:$0xff]
    %v333 = vld [vmem:[%s1 + $0x3b0] sm:$0xff]
    %v334 = vld [vmem:[%s1 + $0x3b8] sm:$0xff]
    %v335 = vld [vmem:[%s1 + $0x3c0] sm:$0xff]
    %v336 = vld [vmem:[%s1 + $0x3c8] sm:$0xff]
    %v337 = vld [vmem:[%s1 + $0x3d0] sm:$0xff]
    %v338 = vld [vmem:[%s1 + $0x3d8] sm:$0xff]
    %v339 = vld [vmem:[%s1 + $0x3e0] sm:$0xff]
    %v340 = vld [vmem:[%s1 + $0x3e8] sm:$0xff]
    %v341 = vld [vmem:[%s1 + $0x3f0] sm:$0xff]
    %v342 = vld [vmem:[%s1 + $0x3f8] sm:$0xff]
    %v343 = vld [vmem:[%s1 + $0x400] sm:$0xff]
    %v344 = vld [vmem:[%s1 + $0x408] sm:$0xff]
    %v345 = vld [vmem:[%s1 + $0x410] sm:$0xff]
    %v346 = vld [vmem:[%s1 + $0x418] sm:$0xff]
    %v347 = vld [vmem:[%s1 + $0x420] sm:$0xff]
    %v348 = vld [vmem:[%s1 + $0x428] sm:$0xff]
    %v349 = vld [vmem:[%s1 + $0x430] sm:$0xff]
    %v350 = vld [vmem:[%s1 + $0x438] sm:$0xff]
    %v351 = vld [vmem:[%s1 + $0x440] sm:$0xff]
    %v352 = vld [vmem:[%s1 + $0x448] sm:$0xff]
    %v353 = vld [vmem:[%s1 + $0x450] sm:$0xff]
    %v354 = vld [vmem:[%s1 + $0x458] sm:$0xff]
    %v355 = vld [vmem:[%s1 + $0x460] sm:$0xff]
    %v356 = vld [vmem:[%s1 + $0x468] sm:$0xff]
    %v357 = vld [vmem:[%s1 + $0x470] sm:$0xff]
    %v358 = vld [vmem:[%s1 + $0x478] sm:$0xff]
    %v359 = vld [vmem:[%s1 + $0x480] sm:$0xff]
    %v360 = vld [vmem:[%s1 + $0x488] sm:$0xff]
    %v361 = vld [vmem:[%s1 + $0x490] sm:$0xff]
    %v362 = vld [vmem:[%s1 + $0x498] sm:$0xff]
    %v363 = vld [vmem:[%s1 + $0x4a0] sm:$0xff]
    %v364 = vld [vmem:[%s1 + $0x4a8] sm:$0xff]
    %v365 = vld [vmem:[%s1 + $0x4b0] sm:$0xff]
    %v366 = vld [vmem:[%s1 + $0x4b8] sm:$0xff]
    %v367 = vld [vmem:[%s1 + $0x4c0] sm:$0xff]
    %v368 = vld [vmem:[%s1 + $0x4c8] sm:$0xff]
    %v369 = vld [vmem:[%s1 + $0x4d0] sm:$0xff]
    %v370 = vld [vmem:[%s1 + $0x4d8] sm:$0xff]
    %v371 = vld [vmem:[%s1 + $0x4e0] sm:$0xff]
    %v372 = vld [vmem:[%s1 + $0x4e8] sm:$0xff]
    %v373 = vld [vmem:[%s1 + $0x4f0] sm:$0xff]
    %v374 = vld [vmem:[%s1 + $0x4f8] sm:$0xff]
    %v375 = vld [vmem:[%s1 + $0x500] sm:$0xff]
    %v376 = vld [vmem:[%s1 + $0x508] sm:$0xff]
    %v377 = vld [vmem:[%s1 + $0x510] sm:$0xff]
    %v378 = vld [vmem:[%s1 + $0x518] sm:$0xff]
    %v379 = vld [vmem:[%s1 + $0x520] sm:$0xff]
    %v380 = vld [vmem:[%s1 + $0x528] sm:$0xff]
    %v381 = vld [vmem:[%s1 + $0x530] sm:$0xff]
    %v382 = vld [vmem:[%s1 + $0x538] sm:$0xff]
    %v383 = vld [vmem:[%s1 + $0x540] sm:$0xff]
    %v384 = vld [vmem:[%s1 + $0x548] sm:$0xff]
    %v385 = vld [vmem:[%s1 + $0x550] sm:$0xff]
    %v386 = vld [vmem:[%s1 + $0x558] sm:$0xff]
    %v387 = vld [vmem:[%s1 + $0x560] sm:$0xff]
    %v388 = vld [vmem:[%s1 + $0x568] sm:$0xff]
    %v389 = vld [vmem:[%s1 + $0x570] sm:$0xff]
    %v390 = vld [vmem:[%s1 + $0x578] sm:$0xff]
    %v391 = vld [vmem:[%s1 + $0x580] sm:$0xff]
    %v392 = vld [vmem:[%s1 + $0x588] sm:$0xff]
    %v393 = vld [vmem:[%s1 + $0x590] sm:$0xff]
    %v394 = vld [vmem:[%s1 + $0x598] sm:$0xff]
    %v395 = vld [vmem:[%s1 + $0x5a0] sm:$0xff]
    %v396 = vld [vmem:[%s1 + $0x5a8] sm:$0xff]
    %v397 = vld [vmem:[%s1 + $0x5b0] sm:$0xff]
    %v398 = vld [vmem:[%s1 + $0x5b8] sm:$0xff]
    %v399 = vld [vmem:[%s1 + $0x5c0] sm:$0xff]
    %v400 = vld [vmem:[%s1 + $0x5c8] sm:$0xff]
    %v401 = vld [vmem:[%s1 + $0x5d0] sm:$0xff]
    %v402 = vld [vmem:[%s1 + $0x5d8] sm:$0xff]
    %v403 = vld [vmem:[%s1 + $0x5e0] sm:$0xff]
    %v404 = vld [vmem:[%s1 + $0x5e8] sm:$0xff]
    %v405 = vld [vmem:[%s1 + $0x5f0] sm:$0xff]
    %v406 = vld [vmem:[%s1 + $0x5f8] sm:$0xff]
    %v407 = vld [vmem:[%s1 + $0x600] sm:$0xff]
    %v408 = vld [vmem:[%s1 + $0x608] sm:$0xff]
    %v409 = vld [vmem:[%s1 + $0x610] sm:$0xff]
    %v410 = vld [vmem:[%s1 + $0x618] sm:$0xff]
    %v411 = vld [vmem:[%s1 + $0x620] sm:$0xff]
    %v412 = vld [vmem:[%s1 + $0x628] sm:$0xff]
    %v413 = vld [vmem:[%s1 + $0x630] sm:$0xff]
    %v414 = vld [vmem:[%s1 + $0x638] sm:$0xff]
    %v415 = vld [vmem:[%s1 + $0x640] sm:$0xff]
    %v416 = vld [vmem:[%s1 + $0x648] sm:$0xff]
    %v417 = vld [vmem:[%s1 + $0x650] sm:$0xff]
    %v418 = vld [vmem:[%s1 + $0x658] sm:$0xff]
    %v419 = vld [vmem:[%s1 + $0x660] sm:$0xff]
    %v420 = vld [vmem:[%s1 + $0x668] sm:$0xff]
    %v421 = vld [vmem:[%s1 + $0x670] sm:$0xff]
    %v422 = vld [vmem:[%s1 + $0x678] sm:$0xff]
    %v423 = vld [vmem:[%s1 + $0x680] sm:$0xff]
    %v424 = vld [vmem:[%s1 + $0x688] sm:$0xff]
    %v425 = vld [vmem:[%s1 + $0x690] sm:$0xff]
    %v426 = vld [vmem:[%s1 + $0x698] sm:$0xff]
    %v427 = vld [vmem:[%s1 + $0x6a0] sm:$0xff]
    %v428 = vld [vmem:[%s1 + $0x6a8] sm:$0xff]
    %v429 = vld [vmem:[%s1 + $0x6b0] sm:$0xff]
    %v430 = vld [vmem:[%s1 + $0x6b8] sm:$0xff]
    %v431 = vld [vmem:[%s1 + $0x6c0] sm:$0xff]
    %v432 = vld [vmem:[%s1 + $0x6c8] sm:$0xff]
    %v433 = vld [vmem:[%s1 + $0x6d0] sm:$0xff]
    %v434 = vld [vmem:[%s1 + $0x6d8] sm:$0xff]
    %v435 = vld [vmem:[%s1 + $0x6e0] sm:$0xff]
    %v436 = vld [vmem:[%s1 + $0x6e8] sm:$0xff]
    %v437 = vld [vmem:[%s1 + $0x6f0] sm:$0xff]
    %v438 = vld [vmem:[%s1 + $0x6f8] sm:$0xff]
    %v439 = vld [vmem:[%s1 + $0x700] sm:$0xff]
    %v440 = vld [vmem:[%s1 + $0x708] sm:$0xff]
    %v441 = vld [vmem:[%s1 + $0x710] sm:$0xff]
    %v442 = vld [vmem:[%s1 + $0x718] sm:$0xff]
    %v443 = vld [vmem:[%s1 + $0x720] sm:$0xff]
    %v444 = vld [vmem:[%s1 + $0x728] sm:$0xff]
    %v445 = vld [vmem:[%s1 + $0x730] sm:$0xff]
    %v446 = vld [vmem:[%s1 + $0x738] sm:$0xff]
    %v447 = vld [vmem:[%s1 + $0x740] sm:$0xff]
    %v448 = vld [vmem:[%s1 + $0x748] sm:$0xff]
    %v449 = vld [vmem:[%s1 + $0x750] sm:$0xff]
    %v450 = vld [vmem:[%s1 + $0x758] sm:$0xff]
    %v451 = vld [vmem:[%s1 + $0x760] sm:$0xff]
    %v452 = vld [vmem:[%s1 + $0x768] sm:$0xff]
    %v453 = vld [vmem:[%s1 + $0x770] sm:$0xff]
    %v454 = vld [vmem:[%s1 + $0x778] sm:$0xff]
    %v455 = vld [vmem:[%s1 + $0x780] sm:$0xff]
    %v456 = vld [vmem:[%s1 + $0x788] sm:$0xff]
    %v457 = vld [vmem:[%s1 + $0x790] sm:$0xff]
    %v458 = vld [vmem:[%s1 + $0x798] sm:$0xff]
    %v459 = vld [vmem:[%s1 + $0x7a0] sm:$0xff]
    %v460 = vld [vmem:[%s1 + $0x7a8] sm:$0xff]
    %v461 = vld [vmem:[%s1 + $0x7b0] sm:$0xff]
    %v462 = vld [vmem:[%s1 + $0x7b8] sm:$0xff]
    %v463 = vld [vmem:[%s1 + $0x7c0] sm:$0xff]
    %v464 = vld [vmem:[%s1 + $0x7c8] sm:$0xff]
    %v465 = vld [vmem:[%s1 + $0x7d0] sm:$0xff]
    %v466 = vld [vmem:[%s1 + $0x7d8] sm:$0xff]
    %v467 = vld [vmem:[%s1 + $0x7e0] sm:$0xff]
    %v468 = vld [vmem:[%s1 + $0x7e8] sm:$0xff]
    %v469 = vld [vmem:[%s1 + $0x7f0] sm:$0xff]
    %v470 = vld [vmem:[%s1 + $0x7f8] sm:$0xff]
    %v471 = vld [vmem:[%s1 + $0x800] sm:$0xff]
    %v472 = vld [vmem:[%s1 + $0x808] sm:$0xff]
    %v473 = vld [vmem:[%s1 + $0x810] sm:$0xff]
    %v474 = vld [vmem:[%s1 + $0x818] sm:$0xff]
    %v475 = vld [vmem:[%s1 + $0x820] sm:$0xff]
    %v476 = vld [vmem:[%s1 + $0x828] sm:$0xff]
    %v477 = vld [vmem:[%s1 + $0x830] sm:$0xff]
    %v478 = vld [vmem:[%s1 + $0x838] sm:$0xff]
    %v479 = vld [vmem:[%s1 + $0x840] sm:$0xff]
    %v480 = vld [vmem:[%s1 + $0x848] sm:$0xff]
    %v481 = vld [vmem:[%s1 + $0x850] sm:$0xff]
    %v482 = vld [vmem:[%s1 + $0x858] sm:$0xff]
    %v483 = vld [vmem:[%s1 + $0x860] sm:$0xff]
    %v484 = vld [vmem:[%s1 + $0x868] sm:$0xff]
    %v485 = vld [vmem:[%s1 + $0x870] sm:$0xff]
    %v486 = vld [vmem:[%s1 + $0x878] sm:$0xff]
    %v487 = vld [vmem:[%s1 + $0x880] sm:$0xff]
    %v488 = vld [vmem:[%s1 + $0x888] sm:$0xff]
    %v489 = vld [vmem:[%s1 + $0x890] sm:$0xff]
    %v490 = vld [vmem:[%s1 + $0x898] sm:$0xff]
    %v491 = vld [vmem:[%s1 + $0x8a0] sm:$0xff]
    %v492 = vld [vmem:[%s1 + $0x8a8] sm:$0xff]
    %v493 = vld [vmem:[%s1 + $0x8b0] sm:$0xff]
    %v494 = vld [vmem:[%s1 + $0x8b8] sm:$0xff]
    %v495 = vld [vmem:[%s1 + $0x8c0] sm:$0xff]
    %v496 = vld [vmem:[%s1 + $0x8c8] sm:$0xff]
    %v497 = vld [vmem:[%s1 + $0x8d0] sm:$0xff]
    %v498 = vld [vmem:[%s1 + $0x8d8] sm:$0xff]
    %v499 = vld [vmem:[%s1 + $0x8e0] sm:$0xff]
    %v500 = vld [vmem:[%s1 + $0x8e8] sm:$0xff]
    %v501 = vld [vmem:[%s1 + $0x8f0] sm:$0xff]
    %v502 = vld [vmem:[%s1 + $0x8f8] sm:$0xff]
    %v503 = vld [vmem:[%s1 + $0x900] sm:$0xff]
    %v504 = vld [vmem:[%s1 + $0x908] sm:$0xff]
    %v505 = vld [vmem:[%s1 + $0x910] sm:$0xff]
    %v506 = vld [vmem:[%s1 + $0x918] sm:$0xff]
    %v507 = vld [vmem:[%s1 + $0x920] sm:$0xff]
    %v508 = vld [vmem:[%s1 + $0x928] sm:$0xff]
    %v509 = vld [vmem:[%s1 + $0x930] sm:$0xff]
    %v510 = vld [vmem:[%s1 + $0x938] sm:$0xff]
    %v511 = vld [vmem:[%s1 + $0x940] sm:$0xff]
    %v512 = vld [vmem:[%s1 + $0x948] sm:$0xff]
    %v513 = vld [vmem:[%s1 + $0x950] sm:$0xff]
    %v514 = vld [vmem:[%s1 + $0x958] sm:$0xff]
    %v515 = vld [vmem:[%s1 + $0x960] sm:$0xff]
    %v516 = vld [vmem:[%s1 + $0x968] sm:$0xff]
    %v517 = vld [vmem:[%s1 + $0x970] sm:$0xff]
    %v518 = vld [vmem:[%s1 + $0x978] sm:$0xff]
    %v519 = vld [vmem:[%s1 + $0x980] sm:$0xff]
    %v520 = vld [vmem:[%s1 + $0x988] sm:$0xff]
    %v521 = vld [vmem:[%s1 + $0x990] sm:$0xff]
    %v522 = vld [vmem:[%s1 + $0x998] sm:$0xff]
    %v523 = vld [vmem:[%s1 + $0x9a0] sm:$0xff]
    %v524 = vld [vmem:[%s1 + $0x9a8] sm:$0xff]
    %v525 = vld [vmem:[%s1 + $0x9b0] sm:$0xff]
    %v526 = vld [vmem:[%s1 + $0x9b8] sm:$0xff]
    %v527 = vld [vmem:[%s1 + $0x9c0] sm:$0xff]
    %v528 = vld [vmem:[%s1 + $0x9c8] sm:$0xff]
    %v529 = vld [vmem:[%s1 + $0x9d0] sm:$0xff]
    %v530 = vld [vmem:[%s1 + $0x9d8] sm:$0xff]
    %v531 = vld [vmem:[%s1 + $0x9e0] sm:$0xff]
    %v532 = vld [vmem:[%s1 + $0x9e8] sm:$0xff]
    %v533 = vld [vmem:[%s1 + $0x9f0] sm:$0xff]
    %v534 = vld [vmem:[%s1 + $0x9f8] sm:$0xff]
    %v535 = vld [vmem:[%s1 + $0xa00] sm:$0xff]
    %v536 = vld [vmem:[%s1 + $0xa08] sm:$0xff]
    %v537 = vld [vmem:[%s1 + $0xa10] sm:$0xff]
    %v538 = vld [vmem:[%s1 + $0xa18] sm:$0xff]
    %v539 = vld [vmem:[%s1 + $0xa20] sm:$0xff]
    %v540 = vld [vmem:[%s1 + $0xa28] sm:$0xff]
    %v541 = vld [vmem:[%s1 + $0xa30] sm:$0xff]
    %v542 = vld [vmem:[%s1 + $0xa38] sm:$0xff]
    %v543 = vld [vmem:[%s1 + $0xa40] sm:$0xff]
    %v544 = vld [vmem:[%s1 + $0xa48] sm:$0xff]
    %v545 = vld [vmem:[%s1 + $0xa50] sm:$0xff]
    %v546 = vld [vmem:[%s1 + $0xa58] sm:$0xff]
    %v547 = vld [vmem:[%s1 + $0xa60] sm:$0xff]
    %v548 = vld [vmem:[%s1 + $0xa68] sm:$0xff]
    %v549 = vld [vmem:[%s1 + $0xa70] sm:$0xff]
    %v550 = vld [vmem:[%s1 + $0xa78] sm:$0xff]
    %v551 = vld [vmem:[%s1 + $0xa80] sm:$0xff]
    %v552 = vld [vmem:[%s1 + $0xa88] sm:$0xff]
    %v553 = vld [vmem:[%s1 + $0xa90] sm:$0xff]
    %v554 = vld [vmem:[%s1 + $0xa98] sm:$0xff]
    %v555 = vld [vmem:[%s1 + $0xaa0] sm:$0xff]
    %v556 = vld [vmem:[%s1 + $0xaa8] sm:$0xff]
    %v557 = vld [vmem:[%s1 + $0xab0] sm:$0xff]
    %v558 = vld [vmem:[%s1 + $0xab8] sm:$0xff]
    %v559 = vld [vmem:[%s1 + $0xac0] sm:$0xff]
    %v560 = vld [vmem:[%s1 + $0xac8] sm:$0xff]
    %v561 = vld [vmem:[%s1 + $0xad0] sm:$0xff]
    %v562 = vld [vmem:[%s1 + $0xad8] sm:$0xff]
    %v563 = vld [vmem:[%s1 + $0xae0] sm:$0xff]
    %v564 = vld [vmem:[%s1 + $0xae8] sm:$0xff]
    %v565 = vld [vmem:[%s1 + $0xaf0] sm:$0xff]
    %v566 = vld [vmem:[%s1 + $0xaf8] sm:$0xff]
    %v567 = vld [vmem:[%s1 + $0xb00] sm:$0xff]
    %v568 = vld [vmem:[%s1 + $0xb08] sm:$0xff]
    %v569 = vld [vmem:[%s1 + $0xb10] sm:$0xff]
    %v570 = vld [vmem:[%s1 + $0xb18] sm:$0xff]
    %v571 = vld [vmem:[%s1 + $0xb20] sm:$0xff]
    %v572 = vld [vmem:[%s1 + $0xb28] sm:$0xff]
    %v573 = vld [vmem:[%s1 + $0xb30] sm:$0xff]
    %v574 = vld [vmem:[%s1 + $0xb38] sm:$0xff]
    %v575 = vld [vmem:[%s1 + $0xb40] sm:$0xff]
    %v576 = vld [vmem:[%s1 + $0xb48] sm:$0xff]
    %v577 = vld [vmem:[%s1 + $0xb50] sm:$0xff]
    %v578 = vld [vmem:[%s1 + $0xb58] sm:$0xff]
    %v579 = vld [vmem:[%s1 + $0xb60] sm:$0xff]
    %v580 = vld [vmem:[%s1 + $0xb68] sm:$0xff]
    %v581 = vld [vmem:[%s1 + $0xb70] sm:$0xff]
    %v582 = vld [vmem:[%s1 + $0xb78] sm:$0xff]
    %v583 = vld [vmem:[%s1 + $0xb80] sm:$0xff]
    %v584 = vld [vmem:[%s1 + $0xb88] sm:$0xff]
    %v585 = vld [vmem:[%s1 + $0xb90] sm:$0xff]
    %v586 = vld [vmem:[%s1 + $0xb98] sm:$0xff]
    %v587 = vld [vmem:[%s1 + $0xba0] sm:$0xff]
    %v588 = vld [vmem:[%s1 + $0xba8] sm:$0xff]
    %v589 = vld [vmem:[%s1 + $0xbb0] sm:$0xff]
    %v590 = vld [vmem:[%s1 + $0xbb8] sm:$0xff]
    %v591 = vld [vmem:[%s1 + $0xbc0] sm:$0xff]
    %v592 = vld [vmem:[%s1 + $0xbc8] sm:$0xff]
    %v593 = vld [vmem:[%s1 + $0xbd0] sm:$0xff]
    %v594 = vld [vmem:[%s1 + $0xbd8] sm:$0xff]
    %v595 = vld [vmem:[%s1 + $0xbe0] sm:$0xff]
    %v596 = vld [vmem:[%s1 + $0xbe8] sm:$0xff]
    %v597 = vld [vmem:[%s1 + $0xbf0] sm:$0xff]
    %v598 = vld [vmem:[%s1 + $0xbf8] sm:$0xff]
    %v599 = vld [vmem:[%s1 + $0xc00] sm:$0xff]
    %v600 = vld [vmem:[%s1 + $0xc08] sm:$0xff]
    %v601 = vld [vmem:[%s1 + $0xc10] sm:$0xff]
    %v602 = vld [vmem:[%s1 + $0xc18] sm:$0xff]
    %v603 = vld [vmem:[%s1 + $0xc20] sm:$0xff]
    %v604 = vld [vmem:[%s1 + $0xc28] sm:$0xff]
    %v605 = vld [vmem:[%s1 + $0xc30] sm:$0xff]
    %v606 = vld [vmem:[%s1 + $0xc38] sm:$0xff]
    %v607 = vld [vmem:[%s1 + $0xc40] sm:$0xff]
    %v608 = vld [vmem:[%s1 + $0xc48] sm:$0xff]
    %v609 = vld [vmem:[%s1 + $0xc50] sm:$0xff]
    %v610 = vld [vmem:[%s1 + $0xc58] sm:$0xff]
    %v611 = vld [vmem:[%s1 + $0xc60] sm:$0xff]
    %v612 = vld [vmem:[%s1 + $0xc68] sm:$0xff]
    %v613 = vld [vmem:[%s1 + $0xc70] sm:$0xff]
    %v614 = vld [vmem:[%s1 + $0xc78] sm:$0xff]
    %v615 = vld [vmem:[%s2] sm:$0x1]
    %v617 = vlaneseq
    %v618 = vshrl.u32 %v617, 7
    %v619 = vsub.s32 0, %v618
    %v620 = vrot.slane %v615, %v619
    %622 = vmatprep.subr.mxu0 0.0
    %623 = vmatpush1.msra.mxu0 %v230
    %624 = vmatprep.subr.mxu0 0.0
    %625 = vmatpush1.msra.mxu0 %v229
    %626 = vmatprep.subr.mxu0 0.0
    %627 = vmatpush1.msra.mxu0 %v228
    %628 = vmatprep.subr.mxu0 0.0
    %629 = vmatpush1.msra.mxu0 %v227
    %630 = vmatprep.subr.mxu0 0.0
    %631 = vmatpush1.msra.mxu0 %v226
    %632 = vmatprep.subr.mxu0 0.0
    %633 = vmatpush1.msra.mxu0 %v225
    %634 = vmatprep.subr.mxu0 0.0
    %635 = vmatpush1.msra.mxu0 %v224
    %636 = vmatprep.subr.mxu0 0.0
    %637 = vmatpush1.msra.mxu0 %v223
    %638 = vmatprep.subr.mxu0 0.0
    %639 = vmatpush1.msra.mxu0 %v222
    %640 = vmatprep.subr.mxu0 0.0
    %641 = vmatpush1.msra.mxu0 %v221
    %642 = vmatprep.subr.mxu0 0.0
    %643 = vmatpush1.msra.mxu0 %v220
    %644 = vmatprep.subr.mxu0 0.0
    %645 = vmatpush1.msra.mxu0 %v219
    %646 = vmatprep.subr.mxu0 0.0
    %647 = vmatpush1.msra.mxu0 %v218
    %648 = vmatprep.subr.mxu0 0.0
    %649 = vmatpush1.msra.mxu0 %v217
    %650 = vmatprep.subr.mxu0 0.0
    %651 = vmatpush1.msra.mxu0 %v216
    %652 = vmatprep.subr.mxu0 0.0
    %653 = vmatpush1.msra.mxu0 %v215
    %654 = vmatprep.subr.mxu0 0.0
    %655 = vmatpush2.msra.mxu0 %v246
    %656 = vmatprep.subr.mxu0 0.0
    %657 = vmatpush2.msra.mxu0 %v245
    %658 = vmatprep.subr.mxu0 0.0
    %659 = vmatpush2.msra.mxu0 %v244
    %660 = vmatprep.subr.mxu0 0.0
    %661 = vmatpush2.msra.mxu0 %v243
    %662 = vmatprep.subr.mxu0 0.0
    %663 = vmatpush2.msra.mxu0 %v242
    %664 = vmatprep.subr.mxu0 0.0
    %665 = vmatpush2.msra.mxu0 %v241
    %666 = vmatprep.subr.mxu0 0.0
    %667 = vmatpush2.msra.mxu0 %v240
    %668 = vmatprep.subr.mxu0 0.0
    %669 = vmatpush2.msra.mxu0 %v239
    %670 = vmatprep.subr.mxu0 0.0
    %671 = vmatpush2.msra.mxu0 %v238
    %672 = vmatprep.subr.mxu0 0.0
    %673 = vmatpush2.msra.mxu0 %v237
    %674 = vmatprep.subr.mxu0 0.0
    %675 = vmatpush2.msra.mxu0 %v236
    %676 = vmatprep.subr.mxu0 0.0
    %677 = vmatpush2.msra.mxu0 %v235
    %678 = vmatprep.subr.mxu0 0.0
    %679 = vmatpush2.msra.mxu0 %v234
    %680 = vmatprep.subr.mxu0 0.0
    %681 = vmatpush2.msra.mxu0 %v233
    %682 = vmatprep.subr.mxu0 0.0
    %683 = vmatpush2.msra.mxu0 %v232
    %684 = vmatprep.subr.mxu0 0.0
    %685 = vmatpush2.msra.mxu0 %v231
    %686 = vmatprep.mubr.f32.mxu0 %v16
    %687 = vmatmul.mubr.f32.gmra.mxu0 %v15
    %v688 = vpop.f32.mrf.mxu0
    %v689 = vadd.f32 %v620, %v688
    %v690 = vpop.f32.mrf.mxu0
    %691 = vmatprep.mubr.f32.mxu0 %v41
    %692 = vmatmul.mubr.f32.gmra.mxu0 %v40
    %v693 = vpop.f32.mrf.mxu0
    %v694 = vadd.f32 %v620, %v693
    %v695 = vpop.f32.mrf.mxu0
    %696 = vmatprep.mubr.f32.mxu0 %v66
    %697 = vmatmul.mubr.f32.gmra.mxu0 %v65
    %v698 = vpop.f32.mrf.mxu0
    %v699 = vadd.f32 %v620, %v698
    %v700 = vpop.f32.mrf.mxu0
    %701 = vmatprep.mubr.f32.mxu0 %v91
    %702 = vmatmul.mubr.f32.gmra.mxu0 %v90
    %v703 = vpop.f32.mrf.mxu0
    %v704 = vadd.f32 %v620, %v703
    %v705 = vpop.f32.mrf.mxu0
    %706 = vmatprep.mubr.f32.mxu0 %v116
    %707 = vmatmul.mubr.f32.gmra.mxu0 %v115
    %v708 = vpop.f32.mrf.mxu0
    %v709 = vadd.f32 %v620, %v708
    %v710 = vpop.f32.mrf.mxu0
    %711 = vmatprep.mubr.f32.mxu0 %v141
    %712 = vmatmul.mubr.f32.gmra.mxu0 %v140
    %v713 = vpop.f32.mrf.mxu0
    %v714 = vadd.f32 %v620, %v713
    %v715 = vpop.f32.mrf.mxu0
    %716 = vmatprep.mubr.f32.mxu0 %v166
    %717 = vmatmul.mubr.f32.gmra.mxu0 %v165
    %v718 = vpop.f32.mrf.mxu0
    %v719 = vadd.f32 %v620, %v718
    %v720 = vpop.f32.mrf.mxu0
    %721 = vmatprep.mubr.f32.mxu0 %v191
    %722 = vmatmul.mubr.f32.gmra.mxu0 %v190
    %v723 = vpop.f32.mrf.mxu0
    %v724 = vadd.f32 %v620, %v723
    %v725 = vpop.f32.mrf.mxu0
    %726 = vdwg.mxu0
    %727 = vmatprep.subr.mxu0 0.0
    %728 = vmatpush1.msra.mxu0 %v262
    %729 = vmatprep.subr.mxu0 0.0
    %730 = vmatpush1.msra.mxu0 %v261
    %731 = vmatprep.subr.mxu0 0.0
    %732 = vmatpush1.msra.mxu0 %v260
    %733 = vmatprep.subr.mxu0 0.0
    %734 = vmatpush1.msra.mxu0 %v259
    %735 = vmatprep.subr.mxu0 0.0
    %736 = vmatpush1.msra.mxu0 %v258
    %737 = vmatprep.subr.mxu0 0.0
    %738 = vmatpush1.msra.mxu0 %v257
    %739 = vmatprep.subr.mxu0 0.0
    %740 = vmatpush1.msra.mxu0 %v256
    %741 = vmatprep.subr.mxu0 0.0
    %742 = vmatpush1.msra.mxu0 %v255
    %743 = vmatprep.subr.mxu0 0.0
    %744 = vmatpush1.msra.mxu0 %v254
    %745 = vmatprep.subr.mxu0 0.0
    %746 = vmatpush1.msra.mxu0 %v253
    %747 = vmatprep.subr.mxu0 0.0
    %748 = vmatpush1.msra.mxu0 %v252
    %749 = vmatprep.subr.mxu0 0.0
    %750 = vmatpush1.msra.mxu0 %v251
    %751 = vmatprep.subr.mxu0 0.0
    %752 = vmatpush1.msra.mxu0 %v250
    %753 = vmatprep.subr.mxu0 0.0
    %754 = vmatpush1.msra.mxu0 %v249
    %755 = vmatprep.subr.mxu0 0.0
    %756 = vmatpush1.msra.mxu0 %v248
    %757 = vmatprep.subr.mxu0 0.0
    %758 = vmatpush1.msra.mxu0 %v247
    %759 = vmatprep.subr.mxu0 0.0
    %760 = vmatpush2.msra.mxu0 %v278
    %761 = vmatprep.subr.mxu0 0.0
    %762 = vmatpush2.msra.mxu0 %v277
    %763 = vmatprep.subr.mxu0 0.0
    %764 = vmatpush2.msra.mxu0 %v276
    %765 = vmatprep.subr.mxu0 0.0
    %766 = vmatpush2.msra.mxu0 %v275
    %767 = vmatprep.subr.mxu0 0.0
    %768 = vmatpush2.msra.mxu0 %v274
    %769 = vmatprep.subr.mxu0 0.0
    %770 = vmatpush2.msra.mxu0 %v273
    %771 = vmatprep.subr.mxu0 0.0
    %772 = vmatpush2.msra.mxu0 %v272
    %773 = vmatprep.subr.mxu0 0.0
    %774 = vmatpush2.msra.mxu0 %v271
    %775 = vmatprep.subr.mxu0 0.0
    %776 = vmatpush2.msra.mxu0 %v270
    %777 = vmatprep.subr.mxu0 0.0
    %778 = vmatpush2.msra.mxu0 %v269
    %779 = vmatprep.subr.mxu0 0.0
    %780 = vmatpush2.msra.mxu0 %v268
    %781 = vmatprep.subr.mxu0 0.0
    %782 = vmatpush2.msra.mxu0 %v267
    %783 = vmatprep.subr.mxu0 0.0
    %784 = vmatpush2.msra.mxu0 %v266
    %785 = vmatprep.subr.mxu0 0.0
    %786 = vmatpush2.msra.mxu0 %v265
    %787 = vmatprep.subr.mxu0 0.0
    %788 = vmatpush2.msra.mxu0 %v264
    %789 = vmatprep.subr.mxu0 0.0
    %790 = vmatpush2.msra.mxu0 %v263
    %791 = vmatprep.mubr.f32.mxu0 %v18
    %792 = vmatmul.mubr.f32.gmra.mxu0 %v17
    %v793 = vpop.f32.mrf.mxu0
    %v794 = vadd.f32 %v689, %v793
    %v795 = vpop.f32.mrf.mxu0
    %796 = vmatprep.mubr.f32.mxu0 %v43
    %797 = vmatmul.mubr.f32.gmra.mxu0 %v42
    %v798 = vpop.f32.mrf.mxu0
    %v799 = vadd.f32 %v694, %v798
    %v800 = vpop.f32.mrf.mxu0
    %801 = vmatprep.mubr.f32.mxu0 %v68
    %802 = vmatmul.mubr.f32.gmra.mxu0 %v67
    %v803 = vpop.f32.mrf.mxu0
    %v804 = vadd.f32 %v699, %v803
    %v805 = vpop.f32.mrf.mxu0
    %806 = vmatprep.mubr.f32.mxu0 %v93
    %807 = vmatmul.mubr.f32.gmra.mxu0 %v92
    %v808 = vpop.f32.mrf.mxu0
    %v809 = vadd.f32 %v704, %v808
    %v810 = vpop.f32.mrf.mxu0
    %811 = vmatprep.mubr.f32.mxu0 %v118
    %812 = vmatmul.mubr.f32.gmra.mxu0 %v117
    %v813 = vpop.f32.mrf.mxu0
    %v814 = vadd.f32 %v709, %v813
    %v815 = vpop.f32.mrf.mxu0
    %816 = vmatprep.mubr.f32.mxu0 %v143
    %817 = vmatmul.mubr.f32.gmra.mxu0 %v142
    %v818 = vpop.f32.mrf.mxu0
    %v819 = vadd.f32 %v714, %v818
    %v820 = vpop.f32.mrf.mxu0
    %821 = vmatprep.mubr.f32.mxu0 %v168
    %822 = vmatmul.mubr.f32.gmra.mxu0 %v167
    %v823 = vpop.f32.mrf.mxu0
    %v824 = vadd.f32 %v719, %v823
    %v825 = vpop.f32.mrf.mxu0
    %826 = vmatprep.mubr.f32.mxu0 %v193
    %827 = vmatmul.mubr.f32.gmra.mxu0 %v192
    %v828 = vpop.f32.mrf.mxu0
    %v829 = vadd.f32 %v724, %v828
    %v830 = vpop.f32.mrf.mxu0
    %831 = vdwg.mxu0
    %832 = vmatprep.subr.mxu0 0.0
    %833 = vmatpush1.msra.mxu0 %v294
    %834 = vmatprep.subr.mxu0 0.0
    %835 = vmatpush1.msra.mxu0 %v293
    %836 = vmatprep.subr.mxu0 0.0
    %837 = vmatpush1.msra.mxu0 %v292
    %838 = vmatprep.subr.mxu0 0.0
    %839 = vmatpush1.msra.mxu0 %v291
    %840 = vmatprep.subr.mxu0 0.0
    %841 = vmatpush1.msra.mxu0 %v290
    %842 = vmatprep.subr.mxu0 0.0
    %843 = vmatpush1.msra.mxu0 %v289
    %844 = vmatprep.subr.mxu0 0.0
    %845 = vmatpush1.msra.mxu0 %v288
    %846 = vmatprep.subr.mxu0 0.0
    %847 = vmatpush1.msra.mxu0 %v287
    %848 = vmatprep.subr.mxu0 0.0
    %849 = vmatpush1.msra.mxu0 %v286
    %850 = vmatprep.subr.mxu0 0.0
    %851 = vmatpush1.msra.mxu0 %v285
    %852 = vmatprep.subr.mxu0 0.0
    %853 = vmatpush1.msra.mxu0 %v284
    %854 = vmatprep.subr.mxu0 0.0
    %855 = vmatpush1.msra.mxu0 %v283
    %856 = vmatprep.subr.mxu0 0.0
    %857 = vmatpush1.msra.mxu0 %v282
    %858 = vmatprep.subr.mxu0 0.0
    %859 = vmatpush1.msra.mxu0 %v281
    %860 = vmatprep.subr.mxu0 0.0
    %861 = vmatpush1.msra.mxu0 %v280
    %862 = vmatprep.subr.mxu0 0.0
    %863 = vmatpush1.msra.mxu0 %v279
    %864 = vmatprep.subr.mxu0 0.0
    %865 = vmatpush2.msra.mxu0 %v310
    %866 = vmatprep.subr.mxu0 0.0
    %867 = vmatpush2.msra.mxu0 %v309
    %868 = vmatprep.subr.mxu0 0.0
    %869 = vmatpush2.msra.mxu0 %v308
    %870 = vmatprep.subr.mxu0 0.0
    %871 = vmatpush2.msra.mxu0 %v307
    %872 = vmatprep.subr.mxu0 0.0
    %873 = vmatpush2.msra.mxu0 %v306
    %874 = vmatprep.subr.mxu0 0.0
    %875 = vmatpush2.msra.mxu0 %v305
    %876 = vmatprep.subr.mxu0 0.0
    %877 = vmatpush2.msra.mxu0 %v304
    %878 = vmatprep.subr.mxu0 0.0
    %879 = vmatpush2.msra.mxu0 %v303
    %880 = vmatprep.subr.mxu0 0.0
    %881 = vmatpush2.msra.mxu0 %v302
    %882 = vmatprep.subr.mxu0 0.0
    %883 = vmatpush2.msra.mxu0 %v301
    %884 = vmatprep.subr.mxu0 0.0
    %885 = vmatpush2.msra.mxu0 %v300
    %886 = vmatprep.subr.mxu0 0.0
    %887 = vmatpush2.msra.mxu0 %v299
    %888 = vmatprep.subr.mxu0 0.0
    %889 = vmatpush2.msra.mxu0 %v298
    %890 = vmatprep.subr.mxu0 0.0
    %891 = vmatpush2.msra.mxu0 %v297
    %892 = vmatprep.subr.mxu0 0.0
    %893 = vmatpush2.msra.mxu0 %v296
    %894 = vmatprep.subr.mxu0 0.0
    %895 = vmatpush2.msra.mxu0 %v295
    %896 = vmatprep.mubr.f32.mxu0 %v20
    %897 = vmatmul.mubr.f32.gmra.mxu0 %v19
    %v898 = vpop.f32.mrf.mxu0
    %v899 = vadd.f32 %v794, %v898
    %v900 = vpop.f32.mrf.mxu0
    %901 = vmatprep.mubr.f32.mxu0 %v45
    %902 = vmatmul.mubr.f32.gmra.mxu0 %v44
    %v903 = vpop.f32.mrf.mxu0
    %v904 = vadd.f32 %v799, %v903
    %v905 = vpop.f32.mrf.mxu0
    %906 = vmatprep.mubr.f32.mxu0 %v70
    %907 = vmatmul.mubr.f32.gmra.mxu0 %v69
    %v908 = vpop.f32.mrf.mxu0
    %v909 = vadd.f32 %v804, %v908
    %v910 = vpop.f32.mrf.mxu0
    %911 = vmatprep.mubr.f32.mxu0 %v95
    %912 = vmatmul.mubr.f32.gmra.mxu0 %v94
    %v913 = vpop.f32.mrf.mxu0
    %v914 = vadd.f32 %v809, %v913
    %v915 = vpop.f32.mrf.mxu0
    %916 = vmatprep.mubr.f32.mxu0 %v120
    %917 = vmatmul.mubr.f32.gmra.mxu0 %v119
    %v918 = vpop.f32.mrf.mxu0
    %v919 = vadd.f32 %v814, %v918
    %v920 = vpop.f32.mrf.mxu0
    %921 = vmatprep.mubr.f32.mxu0 %v145
    %922 = vmatmul.mubr.f32.gmra.mxu0 %v144
    %v923 = vpop.f32.mrf.mxu0
    %v924 = vadd.f32 %v819, %v923
    %v925 = vpop.f32.mrf.mxu0
    %926 = vmatprep.mubr.f32.mxu0 %v170
    %927 = vmatmul.mubr.f32.gmra.mxu0 %v169
    %v928 = vpop.f32.mrf.mxu0
    %v929 = vadd.f32 %v824, %v928
    %v930 = vpop.f32.mrf.mxu0
    %931 = vmatprep.mubr.f32.mxu0 %v195
    %932 = vmatmul.mubr.f32.gmra.mxu0 %v194
    %v933 = vpop.f32.mrf.mxu0
    %v934 = vadd.f32 %v829, %v933
    %v935 = vpop.f32.mrf.mxu0
    %936 = vdwg.mxu0
    %937 = vmatprep.subr.mxu0 0.0
    %938 = vmatpush1.msra.mxu0 %v326
    %939 = vmatprep.subr.mxu0 0.0
    %940 = vmatpush1.msra.mxu0 %v325
    %941 = vmatprep.subr.mxu0 0.0
    %942 = vmatpush1.msra.mxu0 %v324
    %943 = vmatprep.subr.mxu0 0.0
    %944 = vmatpush1.msra.mxu0 %v323
    %945 = vmatprep.subr.mxu0 0.0
    %946 = vmatpush1.msra.mxu0 %v322
    %947 = vmatprep.subr.mxu0 0.0
    %948 = vmatpush1.msra.mxu0 %v321
    %949 = vmatprep.subr.mxu0 0.0
    %950 = vmatpush1.msra.mxu0 %v320
    %951 = vmatprep.subr.mxu0 0.0
    %952 = vmatpush1.msra.mxu0 %v319
    %953 = vmatprep.subr.mxu0 0.0
    %954 = vmatpush1.msra.mxu0 %v318
    %955 = vmatprep.subr.mxu0 0.0
    %956 = vmatpush1.msra.mxu0 %v317
    %957 = vmatprep.subr.mxu0 0.0
    %958 = vmatpush1.msra.mxu0 %v316
    %959 = vmatprep.subr.mxu0 0.0
    %960 = vmatpush1.msra.mxu0 %v315
    %961 = vmatprep.subr.mxu0 0.0
    %962 = vmatpush1.msra.mxu0 %v314
    %963 = vmatprep.subr.mxu0 0.0
    %964 = vmatpush1.msra.mxu0 %v313
    %965 = vmatprep.subr.mxu0 0.0
    %966 = vmatpush1.msra.mxu0 %v312
    %967 = vmatprep.subr.mxu0 0.0
    %968 = vmatpush1.msra.mxu0 %v311
    %969 = vmatprep.subr.mxu0 0.0
    %970 = vmatpush2.msra.mxu0 %v342
    %971 = vmatprep.subr.mxu0 0.0
    %972 = vmatpush2.msra.mxu0 %v341
    %973 = vmatprep.subr.mxu0 0.0
    %974 = vmatpush2.msra.mxu0 %v340
    %975 = vmatprep.subr.mxu0 0.0
    %976 = vmatpush2.msra.mxu0 %v339
    %977 = vmatprep.subr.mxu0 0.0
    %978 = vmatpush2.msra.mxu0 %v338
    %979 = vmatprep.subr.mxu0 0.0
    %980 = vmatpush2.msra.mxu0 %v337
    %981 = vmatprep.subr.mxu0 0.0
    %982 = vmatpush2.msra.mxu0 %v336
    %983 = vmatprep.subr.mxu0 0.0
    %984 = vmatpush2.msra.mxu0 %v335
    %985 = vmatprep.subr.mxu0 0.0
    %986 = vmatpush2.msra.mxu0 %v334
    %987 = vmatprep.subr.mxu0 0.0
    %988 = vmatpush2.msra.mxu0 %v333
    %989 = vmatprep.subr.mxu0 0.0
    %990 = vmatpush2.msra.mxu0 %v332
    %991 = vmatprep.subr.mxu0 0.0
    %992 = vmatpush2.msra.mxu0 %v331
    %993 = vmatprep.subr.mxu0 0.0
    %994 = vmatpush2.msra.mxu0 %v330
    %995 = vmatprep.subr.mxu0 0.0
    %996 = vmatpush2.msra.mxu0 %v329
    %997 = vmatprep.subr.mxu0 0.0
    %998 = vmatpush2.msra.mxu0 %v328
    %999 = vmatprep.subr.mxu0 0.0
    %1000 = vmatpush2.msra.mxu0 %v327
    %1001 = vmatprep.mubr.f32.mxu0 %v22
    %1002 = vmatmul.mubr.f32.gmra.mxu0 %v21
    %v1003 = vpop.f32.mrf.mxu0
    %v1004 = vadd.f32 %v899, %v1003
    %v1005 = vpop.f32.mrf.mxu0
    %1006 = vmatprep.mubr.f32.mxu0 %v47
    %1007 = vmatmul.mubr.f32.gmra.mxu0 %v46
    %v1008 = vpop.f32.mrf.mxu0
    %v1009 = vadd.f32 %v904, %v1008
    %v1010 = vpop.f32.mrf.mxu0
    %1011 = vmatprep.mubr.f32.mxu0 %v72
    %1012 = vmatmul.mubr.f32.gmra.mxu0 %v71
    %v1013 = vpop.f32.mrf.mxu0
    %v1014 = vadd.f32 %v909, %v1013
    %v1015 = vpop.f32.mrf.mxu0
    %1016 = vmatprep.mubr.f32.mxu0 %v97
    %1017 = vmatmul.mubr.f32.gmra.mxu0 %v96
    %v1018 = vpop.f32.mrf.mxu0
    %v1019 = vadd.f32 %v914, %v1018
    %v1020 = vpop.f32.mrf.mxu0
    %1021 = vmatprep.mubr.f32.mxu0 %v122
    %1022 = vmatmul.mubr.f32.gmra.mxu0 %v121
    %v1023 = vpop.f32.mrf.mxu0
    %v1024 = vadd.f32 %v919, %v1023
    %v1025 = vpop.f32.mrf.mxu0
    %1026 = vmatprep.mubr.f32.mxu0 %v147
    %1027 = vmatmul.mubr.f32.gmra.mxu0 %v146
    %v1028 = vpop.f32.mrf.mxu0
    %v1029 = vadd.f32 %v924, %v1028
    %v1030 = vpop.f32.mrf.mxu0
    %1031 = vmatprep.mubr.f32.mxu0 %v172
    %1032 = vmatmul.mubr.f32.gmra.mxu0 %v171
    %v1033 = vpop.f32.mrf.mxu0
    %v1034 = vadd.f32 %v929, %v1033
    %v1035 = vpop.f32.mrf.mxu0
    %1036 = vmatprep.mubr.f32.mxu0 %v197
    %1037 = vmatmul.mubr.f32.gmra.mxu0 %v196
    %v1038 = vpop.f32.mrf.mxu0
    %v1039 = vadd.f32 %v934, %v1038
    %v1040 = vpop.f32.mrf.mxu0
    %1041 = vdwg.mxu0
    %1042 = vmatprep.subr.mxu0 0.0
    %1043 = vmatpush1.msra.mxu0 %v358
    %1044 = vmatprep.subr.mxu0 0.0
    %1045 = vmatpush1.msra.mxu0 %v357
    %1046 = vmatprep.subr.mxu0 0.0
    %1047 = vmatpush1.msra.mxu0 %v356
    %1048 = vmatprep.subr.mxu0 0.0
    %1049 = vmatpush1.msra.mxu0 %v355
    %1050 = vmatprep.subr.mxu0 0.0
    %1051 = vmatpush1.msra.mxu0 %v354
    %1052 = vmatprep.subr.mxu0 0.0
    %1053 = vmatpush1.msra.mxu0 %v353
    %1054 = vmatprep.subr.mxu0 0.0
    %1055 = vmatpush1.msra.mxu0 %v352
    %1056 = vmatprep.subr.mxu0 0.0
    %1057 = vmatpush1.msra.mxu0 %v351
    %1058 = vmatprep.subr.mxu0 0.0
    %1059 = vmatpush1.msra.mxu0 %v350
    %1060 = vmatprep.subr.mxu0 0.0
    %1061 = vmatpush1.msra.mxu0 %v349
    %1062 = vmatprep.subr.mxu0 0.0
    %1063 = vmatpush1.msra.mxu0 %v348
    %1064 = vmatprep.subr.mxu0 0.0
    %1065 = vmatpush1.msra.mxu0 %v347
    %1066 = vmatprep.subr.mxu0 0.0
    %1067 = vmatpush1.msra.mxu0 %v346
    %1068 = vmatprep.subr.mxu0 0.0
    %1069 = vmatpush1.msra.mxu0 %v345
    %1070 = vmatprep.subr.mxu0 0.0
    %1071 = vmatpush1.msra.mxu0 %v344
    %1072 = vmatprep.subr.mxu0 0.0
    %1073 = vmatpush1.msra.mxu0 %v343
    %1074 = vmatprep.subr.mxu0 0.0
    %1075 = vmatpush2.msra.mxu0 %v374
    %1076 = vmatprep.subr.mxu0 0.0
    %1077 = vmatpush2.msra.mxu0 %v373
    %1078 = vmatprep.subr.mxu0 0.0
    %1079 = vmatpush2.msra.mxu0 %v372
    %1080 = vmatprep.subr.mxu0 0.0
    %1081 = vmatpush2.msra.mxu0 %v371
    %1082 = vmatprep.subr.mxu0 0.0
    %1083 = vmatpush2.msra.mxu0 %v370
    %1084 = vmatprep.subr.mxu0 0.0
    %1085 = vmatpush2.msra.mxu0 %v369
    %1086 = vmatprep.subr.mxu0 0.0
    %1087 = vmatpush2.msra.mxu0 %v368
    %1088 = vmatprep.subr.mxu0 0.0
    %1089 = vmatpush2.msra.mxu0 %v367
    %1090 = vmatprep.subr.mxu0 0.0
    %1091 = vmatpush2.msra.mxu0 %v366
    %1092 = vmatprep.subr.mxu0 0.0
    %1093 = vmatpush2.msra.mxu0 %v365
    %1094 = vmatprep.subr.mxu0 0.0
    %1095 = vmatpush2.msra.mxu0 %v364
    %1096 = vmatprep.subr.mxu0 0.0
    %1097 = vmatpush2.msra.mxu0 %v363
    %1098 = vmatprep.subr.mxu0 0.0
    %1099 = vmatpush2.msra.mxu0 %v362
    %1100 = vmatprep.subr.mxu0 0.0
    %1101 = vmatpush2.msra.mxu0 %v361
    %1102 = vmatprep.subr.mxu0 0.0
    %1103 = vmatpush2.msra.mxu0 %v360
    %1104 = vmatprep.subr.mxu0 0.0
    %1105 = vmatpush2.msra.mxu0 %v359
    %1106 = vmatprep.mubr.f32.mxu0 %v24
    %1107 = vmatmul.mubr.f32.gmra.mxu0 %v23
    %v1108 = vpop.f32.mrf.mxu0
    %v1109 = vadd.f32 %v1004, %v1108
    %v1110 = vpop.f32.mrf.mxu0
    %1111 = vmatprep.mubr.f32.mxu0 %v49
    %1112 = vmatmul.mubr.f32.gmra.mxu0 %v48
    %v1113 = vpop.f32.mrf.mxu0
    %v1114 = vadd.f32 %v1009, %v1113
    %v1115 = vpop.f32.mrf.mxu0
    %1116 = vmatprep.mubr.f32.mxu0 %v74
    %1117 = vmatmul.mubr.f32.gmra.mxu0 %v73
    %v1118 = vpop.f32.mrf.mxu0
    %v1119 = vadd.f32 %v1014, %v1118
    %v1120 = vpop.f32.mrf.mxu0
    %1121 = vmatprep.mubr.f32.mxu0 %v99
    %1122 = vmatmul.mubr.f32.gmra.mxu0 %v98
    %v1123 = vpop.f32.mrf.mxu0
    %v1124 = vadd.f32 %v1019, %v1123
    %v1125 = vpop.f32.mrf.mxu0
    %1126 = vmatprep.mubr.f32.mxu0 %v124
    %1127 = vmatmul.mubr.f32.gmra.mxu0 %v123
    %v1128 = vpop.f32.mrf.mxu0
    %v1129 = vadd.f32 %v1024, %v1128
    %v1130 = vpop.f32.mrf.mxu0
    %1131 = vmatprep.mubr.f32.mxu0 %v149
    %1132 = vmatmul.mubr.f32.gmra.mxu0 %v148
    %v1133 = vpop.f32.mrf.mxu0
    %v1134 = vadd.f32 %v1029, %v1133
    %v1135 = vpop.f32.mrf.mxu0
    %1136 = vmatprep.mubr.f32.mxu0 %v174
    %1137 = vmatmul.mubr.f32.gmra.mxu0 %v173
    %v1138 = vpop.f32.mrf.mxu0
    %v1139 = vadd.f32 %v1034, %v1138
    %v1140 = vpop.f32.mrf.mxu0
    %1141 = vmatprep.mubr.f32.mxu0 %v199
    %1142 = vmatmul.mubr.f32.gmra.mxu0 %v198
    %v1143 = vpop.f32.mrf.mxu0
    %v1144 = vadd.f32 %v1039, %v1143
    %v1145 = vpop.f32.mrf.mxu0
    %1146 = vdwg.mxu0
    %1147 = vmatprep.subr.mxu0 0.0
    %1148 = vmatpush1.msra.mxu0 %v390
    %1149 = vmatprep.subr.mxu0 0.0
    %1150 = vmatpush1.msra.mxu0 %v389
    %1151 = vmatprep.subr.mxu0 0.0
    %1152 = vmatpush1.msra.mxu0 %v388
    %1153 = vmatprep.subr.mxu0 0.0
    %1154 = vmatpush1.msra.mxu0 %v387
    %1155 = vmatprep.subr.mxu0 0.0
    %1156 = vmatpush1.msra.mxu0 %v386
    %1157 = vmatprep.subr.mxu0 0.0
    %1158 = vmatpush1.msra.mxu0 %v385
    %1159 = vmatprep.subr.mxu0 0.0
    %1160 = vmatpush1.msra.mxu0 %v384
    %1161 = vmatprep.subr.mxu0 0.0
    %1162 = vmatpush1.msra.mxu0 %v383
    %1163 = vmatprep.subr.mxu0 0.0
    %1164 = vmatpush1.msra.mxu0 %v382
    %1165 = vmatprep.subr.mxu0 0.0
    %1166 = vmatpush1.msra.mxu0 %v381
    %1167 = vmatprep.subr.mxu0 0.0
    %1168 = vmatpush1.msra.mxu0 %v380
    %1169 = vmatprep.subr.mxu0 0.0
    %1170 = vmatpush1.msra.mxu0 %v379
    %1171 = vmatprep.subr.mxu0 0.0
    %1172 = vmatpush1.msra.mxu0 %v378
    %1173 = vmatprep.subr.mxu0 0.0
    %1174 = vmatpush1.msra.mxu0 %v377
    %1175 = vmatprep.subr.mxu0 0.0
    %1176 = vmatpush1.msra.mxu0 %v376
    %1177 = vmatprep.subr.mxu0 0.0
    %1178 = vmatpush1.msra.mxu0 %v375
    %1179 = vmatprep.subr.mxu0 0.0
    %1180 = vmatpush2.msra.mxu0 %v406
    %1181 = vmatprep.subr.mxu0 0.0
    %1182 = vmatpush2.msra.mxu0 %v405
    %1183 = vmatprep.subr.mxu0 0.0
    %1184 = vmatpush2.msra.mxu0 %v404
    %1185 = vmatprep.subr.mxu0 0.0
    %1186 = vmatpush2.msra.mxu0 %v403
    %1187 = vmatprep.subr.mxu0 0.0
    %1188 = vmatpush2.msra.mxu0 %v402
    %1189 = vmatprep.subr.mxu0 0.0
    %1190 = vmatpush2.msra.mxu0 %v401
    %1191 = vmatprep.subr.mxu0 0.0
    %1192 = vmatpush2.msra.mxu0 %v400
    %1193 = vmatprep.subr.mxu0 0.0
    %1194 = vmatpush2.msra.mxu0 %v399
    %1195 = vmatprep.subr.mxu0 0.0
    %1196 = vmatpush2.msra.mxu0 %v398
    %1197 = vmatprep.subr.mxu0 0.0
    %1198 = vmatpush2.msra.mxu0 %v397
    %1199 = vmatprep.subr.mxu0 0.0
    %1200 = vmatpush2.msra.mxu0 %v396
    %1201 = vmatprep.subr.mxu0 0.0
    %1202 = vmatpush2.msra.mxu0 %v395
    %1203 = vmatprep.subr.mxu0 0.0
    %1204 = vmatpush2.msra.mxu0 %v394
    %1205 = vmatprep.subr.mxu0 0.0
    %1206 = vmatpush2.msra.mxu0 %v393
    %1207 = vmatprep.subr.mxu0 0.0
    %1208 = vmatpush2.msra.mxu0 %v392
    %1209 = vmatprep.subr.mxu0 0.0
    %1210 = vmatpush2.msra.mxu0 %v391
    %1211 = vmatprep.mubr.f32.mxu0 %v26
    %1212 = vmatmul.mubr.f32.gmra.mxu0 %v25
    %v1213 = vpop.f32.mrf.mxu0
    %v1214 = vadd.f32 %v1109, %v1213
    %v1215 = vpop.f32.mrf.mxu0
    %1216 = vmatprep.mubr.f32.mxu0 %v51
    %1217 = vmatmul.mubr.f32.gmra.mxu0 %v50
    %v1218 = vpop.f32.mrf.mxu0
    %v1219 = vadd.f32 %v1114, %v1218
    %v1220 = vpop.f32.mrf.mxu0
    %1221 = vmatprep.mubr.f32.mxu0 %v76
    %1222 = vmatmul.mubr.f32.gmra.mxu0 %v75
    %v1223 = vpop.f32.mrf.mxu0
    %v1224 = vadd.f32 %v1119, %v1223
    %v1225 = vpop.f32.mrf.mxu0
    %1226 = vmatprep.mubr.f32.mxu0 %v101
    %1227 = vmatmul.mubr.f32.gmra.mxu0 %v100
    %v1228 = vpop.f32.mrf.mxu0
    %v1229 = vadd.f32 %v1124, %v1228
    %v1230 = vpop.f32.mrf.mxu0
    %1231 = vmatprep.mubr.f32.mxu0 %v126
    %1232 = vmatmul.mubr.f32.gmra.mxu0 %v125
    %v1233 = vpop.f32.mrf.mxu0
    %v1234 = vadd.f32 %v1129, %v1233
    %v1235 = vpop.f32.mrf.mxu0
    %1236 = vmatprep.mubr.f32.mxu0 %v151
    %1237 = vmatmul.mubr.f32.gmra.mxu0 %v150
    %v1238 = vpop.f32.mrf.mxu0
    %v1239 = vadd.f32 %v1134, %v1238
    %v1240 = vpop.f32.mrf.mxu0
    %1241 = vmatprep.mubr.f32.mxu0 %v176
    %1242 = vmatmul.mubr.f32.gmra.mxu0 %v175
    %v1243 = vpop.f32.mrf.mxu0
    %v1244 = vadd.f32 %v1139, %v1243
    %v1245 = vpop.f32.mrf.mxu0
    %1246 = vmatprep.mubr.f32.mxu0 %v201
    %1247 = vmatmul.mubr.f32.gmra.mxu0 %v200
    %v1248 = vpop.f32.mrf.mxu0
    %v1249 = vadd.f32 %v1144, %v1248
    %v1250 = vpop.f32.mrf.mxu0
    %1251 = vdwg.mxu0
    %1252 = vmatprep.subr.mxu0 0.0
    %1253 = vmatpush1.msra.mxu0 %v422
    %1254 = vmatprep.subr.mxu0 0.0
    %1255 = vmatpush1.msra.mxu0 %v421
    %1256 = vmatprep.subr.mxu0 0.0
    %1257 = vmatpush1.msra.mxu0 %v420
    %1258 = vmatprep.subr.mxu0 0.0
    %1259 = vmatpush1.msra.mxu0 %v419
    %1260 = vmatprep.subr.mxu0 0.0
    %1261 = vmatpush1.msra.mxu0 %v418
    %1262 = vmatprep.subr.mxu0 0.0
    %1263 = vmatpush1.msra.mxu0 %v417
    %1264 = vmatprep.subr.mxu0 0.0
    %1265 = vmatpush1.msra.mxu0 %v416
    %1266 = vmatprep.subr.mxu0 0.0
    %1267 = vmatpush1.msra.mxu0 %v415
    %1268 = vmatprep.subr.mxu0 0.0
    %1269 = vmatpush1.msra.mxu0 %v414
    %1270 = vmatprep.subr.mxu0 0.0
    %1271 = vmatpush1.msra.mxu0 %v413
    %1272 = vmatprep.subr.mxu0 0.0
    %1273 = vmatpush1.msra.mxu0 %v412
    %1274 = vmatprep.subr.mxu0 0.0
    %1275 = vmatpush1.msra.mxu0 %v411
    %1276 = vmatprep.subr.mxu0 0.0
    %1277 = vmatpush1.msra.mxu0 %v410
    %1278 = vmatprep.subr.mxu0 0.0
    %1279 = vmatpush1.msra.mxu0 %v409
    %1280 = vmatprep.subr.mxu0 0.0
    %1281 = vmatpush1.msra.mxu0 %v408
    %1282 = vmatprep.subr.mxu0 0.0
    %1283 = vmatpush1.msra.mxu0 %v407
    %1284 = vmatprep.subr.mxu0 0.0
    %1285 = vmatpush2.msra.mxu0 %v438
    %1286 = vmatprep.subr.mxu0 0.0
    %1287 = vmatpush2.msra.mxu0 %v437
    %1288 = vmatprep.subr.mxu0 0.0
    %1289 = vmatpush2.msra.mxu0 %v436
    %1290 = vmatprep.subr.mxu0 0.0
    %1291 = vmatpush2.msra.mxu0 %v435
    %1292 = vmatprep.subr.mxu0 0.0
    %1293 = vmatpush2.msra.mxu0 %v434
    %1294 = vmatprep.subr.mxu0 0.0
    %1295 = vmatpush2.msra.mxu0 %v433
    %1296 = vmatprep.subr.mxu0 0.0
    %1297 = vmatpush2.msra.mxu0 %v432
    %1298 = vmatprep.subr.mxu0 0.0
    %1299 = vmatpush2.msra.mxu0 %v431
    %1300 = vmatprep.subr.mxu0 0.0
    %1301 = vmatpush2.msra.mxu0 %v430
    %1302 = vmatprep.subr.mxu0 0.0
    %1303 = vmatpush2.msra.mxu0 %v429
    %1304 = vmatprep.subr.mxu0 0.0
    %1305 = vmatpush2.msra.mxu0 %v428
    %1306 = vmatprep.subr.mxu0 0.0
    %1307 = vmatpush2.msra.mxu0 %v427
    %1308 = vmatprep.subr.mxu0 0.0
    %1309 = vmatpush2.msra.mxu0 %v426
    %1310 = vmatprep.subr.mxu0 0.0
    %1311 = vmatpush2.msra.mxu0 %v425
    %1312 = vmatprep.subr.mxu0 0.0
    %1313 = vmatpush2.msra.mxu0 %v424
    %1314 = vmatprep.subr.mxu0 0.0
    %1315 = vmatpush2.msra.mxu0 %v423
    %1316 = vmatprep.mubr.f32.mxu0 %v28
    %1317 = vmatmul.mubr.f32.gmra.mxu0 %v27
    %v1318 = vpop.f32.mrf.mxu0
    %v1319 = vadd.f32 %v1214, %v1318
    %v1320 = vpop.f32.mrf.mxu0
    %1321 = vmatprep.mubr.f32.mxu0 %v53
    %1322 = vmatmul.mubr.f32.gmra.mxu0 %v52
    %v1323 = vpop.f32.mrf.mxu0
    %v1324 = vadd.f32 %v1219, %v1323
    %v1325 = vpop.f32.mrf.mxu0
    %1326 = vmatprep.mubr.f32.mxu0 %v78
    %1327 = vmatmul.mubr.f32.gmra.mxu0 %v77
    %v1328 = vpop.f32.mrf.mxu0
    %v1329 = vadd.f32 %v1224, %v1328
    %v1330 = vpop.f32.mrf.mxu0
    %1331 = vmatprep.mubr.f32.mxu0 %v103
    %1332 = vmatmul.mubr.f32.gmra.mxu0 %v102
    %v1333 = vpop.f32.mrf.mxu0
    %v1334 = vadd.f32 %v1229, %v1333
    %v1335 = vpop.f32.mrf.mxu0
    %1336 = vmatprep.mubr.f32.mxu0 %v128
    %1337 = vmatmul.mubr.f32.gmra.mxu0 %v127
    %v1338 = vpop.f32.mrf.mxu0
    %v1339 = vadd.f32 %v1234, %v1338
    %v1340 = vpop.f32.mrf.mxu0
    %1341 = vmatprep.mubr.f32.mxu0 %v153
    %1342 = vmatmul.mubr.f32.gmra.mxu0 %v152
    %v1343 = vpop.f32.mrf.mxu0
    %v1344 = vadd.f32 %v1239, %v1343
    %v1345 = vpop.f32.mrf.mxu0
    %1346 = vmatprep.mubr.f32.mxu0 %v178
    %1347 = vmatmul.mubr.f32.gmra.mxu0 %v177
    %v1348 = vpop.f32.mrf.mxu0
    %v1349 = vadd.f32 %v1244, %v1348
    %v1350 = vpop.f32.mrf.mxu0
    %1351 = vmatprep.mubr.f32.mxu0 %v203
    %1352 = vmatmul.mubr.f32.gmra.mxu0 %v202
    %v1353 = vpop.f32.mrf.mxu0
    %v1354 = vadd.f32 %v1249, %v1353
    %v1355 = vpop.f32.mrf.mxu0
    %1356 = vdwg.mxu0
    %1357 = vmatprep.subr.mxu0 0.0
    %1358 = vmatpush1.msra.mxu0 %v454
    %1359 = vmatprep.subr.mxu0 0.0
    %1360 = vmatpush1.msra.mxu0 %v453
    %1361 = vmatprep.subr.mxu0 0.0
    %1362 = vmatpush1.msra.mxu0 %v452
    %1363 = vmatprep.subr.mxu0 0.0
    %1364 = vmatpush1.msra.mxu0 %v451
    %1365 = vmatprep.subr.mxu0 0.0
    %1366 = vmatpush1.msra.mxu0 %v450
    %1367 = vmatprep.subr.mxu0 0.0
    %1368 = vmatpush1.msra.mxu0 %v449
    %1369 = vmatprep.subr.mxu0 0.0
    %1370 = vmatpush1.msra.mxu0 %v448
    %1371 = vmatprep.subr.mxu0 0.0
    %1372 = vmatpush1.msra.mxu0 %v447
    %1373 = vmatprep.subr.mxu0 0.0
    %1374 = vmatpush1.msra.mxu0 %v446
    %1375 = vmatprep.subr.mxu0 0.0
    %1376 = vmatpush1.msra.mxu0 %v445
    %1377 = vmatprep.subr.mxu0 0.0
    %1378 = vmatpush1.msra.mxu0 %v444
    %1379 = vmatprep.subr.mxu0 0.0
    %1380 = vmatpush1.msra.mxu0 %v443
    %1381 = vmatprep.subr.mxu0 0.0
    %1382 = vmatpush1.msra.mxu0 %v442
    %1383 = vmatprep.subr.mxu0 0.0
    %1384 = vmatpush1.msra.mxu0 %v441
    %1385 = vmatprep.subr.mxu0 0.0
    %1386 = vmatpush1.msra.mxu0 %v440
    %1387 = vmatprep.subr.mxu0 0.0
    %1388 = vmatpush1.msra.mxu0 %v439
    %1389 = vmatprep.subr.mxu0 0.0
    %1390 = vmatpush2.msra.mxu0 %v470
    %1391 = vmatprep.subr.mxu0 0.0
    %1392 = vmatpush2.msra.mxu0 %v469
    %1393 = vmatprep.subr.mxu0 0.0
    %1394 = vmatpush2.msra.mxu0 %v468
    %1395 = vmatprep.subr.mxu0 0.0
    %1396 = vmatpush2.msra.mxu0 %v467
    %1397 = vmatprep.subr.mxu0 0.0
    %1398 = vmatpush2.msra.mxu0 %v466
    %1399 = vmatprep.subr.mxu0 0.0
    %1400 = vmatpush2.msra.mxu0 %v465
    %1401 = vmatprep.subr.mxu0 0.0
    %1402 = vmatpush2.msra.mxu0 %v464
    %1403 = vmatprep.subr.mxu0 0.0
    %1404 = vmatpush2.msra.mxu0 %v463
    %1405 = vmatprep.subr.mxu0 0.0
    %1406 = vmatpush2.msra.mxu0 %v462
    %1407 = vmatprep.subr.mxu0 0.0
    %1408 = vmatpush2.msra.mxu0 %v461
    %1409 = vmatprep.subr.mxu0 0.0
    %1410 = vmatpush2.msra.mxu0 %v460
    %1411 = vmatprep.subr.mxu0 0.0
    %1412 = vmatpush2.msra.mxu0 %v459
    %1413 = vmatprep.subr.mxu0 0.0
    %1414 = vmatpush2.msra.mxu0 %v458
    %1415 = vmatprep.subr.mxu0 0.0
    %1416 = vmatpush2.msra.mxu0 %v457
    %1417 = vmatprep.subr.mxu0 0.0
    %1418 = vmatpush2.msra.mxu0 %v456
    %1419 = vmatprep.subr.mxu0 0.0
    %1420 = vmatpush2.msra.mxu0 %v455
    %1421 = vmatprep.mubr.f32.mxu0 %v30
    %1422 = vmatmul.mubr.f32.gmra.mxu0 %v29
    %v1423 = vpop.f32.mrf.mxu0
    %v1424 = vadd.f32 %v1319, %v1423
    %v1425 = vpop.f32.mrf.mxu0
    %1426 = vmatprep.mubr.f32.mxu0 %v55
    %1427 = vmatmul.mubr.f32.gmra.mxu0 %v54
    %v1428 = vpop.f32.mrf.mxu0
    %v1429 = vadd.f32 %v1324, %v1428
    %v1430 = vpop.f32.mrf.mxu0
    %1431 = vmatprep.mubr.f32.mxu0 %v80
    %1432 = vmatmul.mubr.f32.gmra.mxu0 %v79
    %v1433 = vpop.f32.mrf.mxu0
    %v1434 = vadd.f32 %v1329, %v1433
    %v1435 = vpop.f32.mrf.mxu0
    %1436 = vmatprep.mubr.f32.mxu0 %v105
    %1437 = vmatmul.mubr.f32.gmra.mxu0 %v104
    %v1438 = vpop.f32.mrf.mxu0
    %v1439 = vadd.f32 %v1334, %v1438
    %v1440 = vpop.f32.mrf.mxu0
    %1441 = vmatprep.mubr.f32.mxu0 %v130
    %1442 = vmatmul.mubr.f32.gmra.mxu0 %v129
    %v1443 = vpop.f32.mrf.mxu0
    %v1444 = vadd.f32 %v1339, %v1443
    %v1445 = vpop.f32.mrf.mxu0
    %1446 = vmatprep.mubr.f32.mxu0 %v155
    %1447 = vmatmul.mubr.f32.gmra.mxu0 %v154
    %v1448 = vpop.f32.mrf.mxu0
    %v1449 = vadd.f32 %v1344, %v1448
    %v1450 = vpop.f32.mrf.mxu0
    %1451 = vmatprep.mubr.f32.mxu0 %v180
    %1452 = vmatmul.mubr.f32.gmra.mxu0 %v179
    %v1453 = vpop.f32.mrf.mxu0
    %v1454 = vadd.f32 %v1349, %v1453
    %v1455 = vpop.f32.mrf.mxu0
    %1456 = vmatprep.mubr.f32.mxu0 %v205
    %1457 = vmatmul.mubr.f32.gmra.mxu0 %v204
    %v1458 = vpop.f32.mrf.mxu0
    %v1459 = vadd.f32 %v1354, %v1458
    %v1460 = vpop.f32.mrf.mxu0
    %1461 = vdwg.mxu0
    %1462 = vmatprep.subr.mxu0 0.0
    %1463 = vmatpush1.msra.mxu0 %v486
    %1464 = vmatprep.subr.mxu0 0.0
    %1465 = vmatpush1.msra.mxu0 %v485
    %1466 = vmatprep.subr.mxu0 0.0
    %1467 = vmatpush1.msra.mxu0 %v484
    %1468 = vmatprep.subr.mxu0 0.0
    %1469 = vmatpush1.msra.mxu0 %v483
    %1470 = vmatprep.subr.mxu0 0.0
    %1471 = vmatpush1.msra.mxu0 %v482
    %1472 = vmatprep.subr.mxu0 0.0
    %1473 = vmatpush1.msra.mxu0 %v481
    %1474 = vmatprep.subr.mxu0 0.0
    %1475 = vmatpush1.msra.mxu0 %v480
    %1476 = vmatprep.subr.mxu0 0.0
    %1477 = vmatpush1.msra.mxu0 %v479
    %1478 = vmatprep.subr.mxu0 0.0
    %1479 = vmatpush1.msra.mxu0 %v478
    %1480 = vmatprep.subr.mxu0 0.0
    %1481 = vmatpush1.msra.mxu0 %v477
    %1482 = vmatprep.subr.mxu0 0.0
    %1483 = vmatpush1.msra.mxu0 %v476
    %1484 = vmatprep.subr.mxu0 0.0
    %1485 = vmatpush1.msra.mxu0 %v475
    %1486 = vmatprep.subr.mxu0 0.0
    %1487 = vmatpush1.msra.mxu0 %v474
    %1488 = vmatprep.subr.mxu0 0.0
    %1489 = vmatpush1.msra.mxu0 %v473
    %1490 = vmatprep.subr.mxu0 0.0
    %1491 = vmatpush1.msra.mxu0 %v472
    %1492 = vmatprep.subr.mxu0 0.0
    %1493 = vmatpush1.msra.mxu0 %v471
    %1494 = vmatprep.subr.mxu0 0.0
    %1495 = vmatpush2.msra.mxu0 %v502
    %1496 = vmatprep.subr.mxu0 0.0
    %1497 = vmatpush2.msra.mxu0 %v501
    %1498 = vmatprep.subr.mxu0 0.0
    %1499 = vmatpush2.msra.mxu0 %v500
    %1500 = vmatprep.subr.mxu0 0.0
    %1501 = vmatpush2.msra.mxu0 %v499
    %1502 = vmatprep.subr.mxu0 0.0
    %1503 = vmatpush2.msra.mxu0 %v498
    %1504 = vmatprep.subr.mxu0 0.0
    %1505 = vmatpush2.msra.mxu0 %v497
    %1506 = vmatprep.subr.mxu0 0.0
    %1507 = vmatpush2.msra.mxu0 %v496
    %1508 = vmatprep.subr.mxu0 0.0
    %1509 = vmatpush2.msra.mxu0 %v495
    %1510 = vmatprep.subr.mxu0 0.0
    %1511 = vmatpush2.msra.mxu0 %v494
    %1512 = vmatprep.subr.mxu0 0.0
    %1513 = vmatpush2.msra.mxu0 %v493
    %1514 = vmatprep.subr.mxu0 0.0
    %1515 = vmatpush2.msra.mxu0 %v492
    %1516 = vmatprep.subr.mxu0 0.0
    %1517 = vmatpush2.msra.mxu0 %v491
    %1518 = vmatprep.subr.mxu0 0.0
    %1519 = vmatpush2.msra.mxu0 %v490
    %1520 = vmatprep.subr.mxu0 0.0
    %1521 = vmatpush2.msra.mxu0 %v489
    %1522 = vmatprep.subr.mxu0 0.0
    %1523 = vmatpush2.msra.mxu0 %v488
    %1524 = vmatprep.subr.mxu0 0.0
    %1525 = vmatpush2.msra.mxu0 %v487
    %1526 = vmatprep.mubr.f32.mxu0 %v32
    %1527 = vmatmul.mubr.f32.gmra.mxu0 %v31
    %v1528 = vpop.f32.mrf.mxu0
    %v1529 = vadd.f32 %v1424, %v1528
    %v1530 = vpop.f32.mrf.mxu0
    %1531 = vmatprep.mubr.f32.mxu0 %v57
    %1532 = vmatmul.mubr.f32.gmra.mxu0 %v56
    %v1533 = vpop.f32.mrf.mxu0
    %v1534 = vadd.f32 %v1429, %v1533
    %v1535 = vpop.f32.mrf.mxu0
    %1536 = vmatprep.mubr.f32.mxu0 %v82
    %1537 = vmatmul.mubr.f32.gmra.mxu0 %v81
    %v1538 = vpop.f32.mrf.mxu0
    %v1539 = vadd.f32 %v1434, %v1538
    %v1540 = vpop.f32.mrf.mxu0
    %1541 = vmatprep.mubr.f32.mxu0 %v107
    %1542 = vmatmul.mubr.f32.gmra.mxu0 %v106
    %v1543 = vpop.f32.mrf.mxu0
    %v1544 = vadd.f32 %v1439, %v1543
    %v1545 = vpop.f32.mrf.mxu0
    %1546 = vmatprep.mubr.f32.mxu0 %v132
    %1547 = vmatmul.mubr.f32.gmra.mxu0 %v131
    %v1548 = vpop.f32.mrf.mxu0
    %v1549 = vadd.f32 %v1444, %v1548
    %v1550 = vpop.f32.mrf.mxu0
    %1551 = vmatprep.mubr.f32.mxu0 %v157
    %1552 = vmatmul.mubr.f32.gmra.mxu0 %v156
    %v1553 = vpop.f32.mrf.mxu0
    %v1554 = vadd.f32 %v1449, %v1553
    %v1555 = vpop.f32.mrf.mxu0
    %1556 = vmatprep.mubr.f32.mxu0 %v182
    %1557 = vmatmul.mubr.f32.gmra.mxu0 %v181
    %v1558 = vpop.f32.mrf.mxu0
    %v1559 = vadd.f32 %v1454, %v1558
    %v1560 = vpop.f32.mrf.mxu0
    %1561 = vmatprep.mubr.f32.mxu0 %v207
    %1562 = vmatmul.mubr.f32.gmra.mxu0 %v206
    %v1563 = vpop.f32.mrf.mxu0
    %v1564 = vadd.f32 %v1459, %v1563
    %v1565 = vpop.f32.mrf.mxu0
    %1566 = vdwg.mxu0
    %1567 = vmatprep.subr.mxu0 0.0
    %1568 = vmatpush1.msra.mxu0 %v518
    %1569 = vmatprep.subr.mxu0 0.0
    %1570 = vmatpush1.msra.mxu0 %v517
    %1571 = vmatprep.subr.mxu0 0.0
    %1572 = vmatpush1.msra.mxu0 %v516
    %1573 = vmatprep.subr.mxu0 0.0
    %1574 = vmatpush1.msra.mxu0 %v515
    %1575 = vmatprep.subr.mxu0 0.0
    %1576 = vmatpush1.msra.mxu0 %v514
    %1577 = vmatprep.subr.mxu0 0.0
    %1578 = vmatpush1.msra.mxu0 %v513
    %1579 = vmatprep.subr.mxu0 0.0
    %1580 = vmatpush1.msra.mxu0 %v512
    %1581 = vmatprep.subr.mxu0 0.0
    %1582 = vmatpush1.msra.mxu0 %v511
    %1583 = vmatprep.subr.mxu0 0.0
    %1584 = vmatpush1.msra.mxu0 %v510
    %1585 = vmatprep.subr.mxu0 0.0
    %1586 = vmatpush1.msra.mxu0 %v509
    %1587 = vmatprep.subr.mxu0 0.0
    %1588 = vmatpush1.msra.mxu0 %v508
    %1589 = vmatprep.subr.mxu0 0.0
    %1590 = vmatpush1.msra.mxu0 %v507
    %1591 = vmatprep.subr.mxu0 0.0
    %1592 = vmatpush1.msra.mxu0 %v506
    %1593 = vmatprep.subr.mxu0 0.0
    %1594 = vmatpush1.msra.mxu0 %v505
    %1595 = vmatprep.subr.mxu0 0.0
    %1596 = vmatpush1.msra.mxu0 %v504
    %1597 = vmatprep.subr.mxu0 0.0
    %1598 = vmatpush1.msra.mxu0 %v503
    %1599 = vmatprep.subr.mxu0 0.0
    %1600 = vmatpush2.msra.mxu0 %v534
    %1601 = vmatprep.subr.mxu0 0.0
    %1602 = vmatpush2.msra.mxu0 %v533
    %1603 = vmatprep.subr.mxu0 0.0
    %1604 = vmatpush2.msra.mxu0 %v532
    %1605 = vmatprep.subr.mxu0 0.0
    %1606 = vmatpush2.msra.mxu0 %v531
    %1607 = vmatprep.subr.mxu0 0.0
    %1608 = vmatpush2.msra.mxu0 %v530
    %1609 = vmatprep.subr.mxu0 0.0
    %1610 = vmatpush2.msra.mxu0 %v529
    %1611 = vmatprep.subr.mxu0 0.0
    %1612 = vmatpush2.msra.mxu0 %v528
    %1613 = vmatprep.subr.mxu0 0.0
    %1614 = vmatpush2.msra.mxu0 %v527
    %1615 = vmatprep.subr.mxu0 0.0
    %1616 = vmatpush2.msra.mxu0 %v526
    %1617 = vmatprep.subr.mxu0 0.0
    %1618 = vmatpush2.msra.mxu0 %v525
    %1619 = vmatprep.subr.mxu0 0.0
    %1620 = vmatpush2.msra.mxu0 %v524
    %1621 = vmatprep.subr.mxu0 0.0
    %1622 = vmatpush2.msra.mxu0 %v523
    %1623 = vmatprep.subr.mxu0 0.0
    %1624 = vmatpush2.msra.mxu0 %v522
    %1625 = vmatprep.subr.mxu0 0.0
    %1626 = vmatpush2.msra.mxu0 %v521
    %1627 = vmatprep.subr.mxu0 0.0
    %1628 = vmatpush2.msra.mxu0 %v520
    %1629 = vmatprep.subr.mxu0 0.0
    %1630 = vmatpush2.msra.mxu0 %v519
    %1631 = vmatprep.mubr.f32.mxu0 %v34
    %1632 = vmatmul.mubr.f32.gmra.mxu0 %v33
    %v1633 = vpop.f32.mrf.mxu0
    %v1634 = vadd.f32 %v1529, %v1633
    %v1635 = vpop.f32.mrf.mxu0
    %1636 = vmatprep.mubr.f32.mxu0 %v59
    %1637 = vmatmul.mubr.f32.gmra.mxu0 %v58
    %v1638 = vpop.f32.mrf.mxu0
    %v1639 = vadd.f32 %v1534, %v1638
    %v1640 = vpop.f32.mrf.mxu0
    %1641 = vmatprep.mubr.f32.mxu0 %v84
    %1642 = vmatmul.mubr.f32.gmra.mxu0 %v83
    %v1643 = vpop.f32.mrf.mxu0
    %v1644 = vadd.f32 %v1539, %v1643
    %v1645 = vpop.f32.mrf.mxu0
    %1646 = vmatprep.mubr.f32.mxu0 %v109
    %1647 = vmatmul.mubr.f32.gmra.mxu0 %v108
    %v1648 = vpop.f32.mrf.mxu0
    %v1649 = vadd.f32 %v1544, %v1648
    %v1650 = vpop.f32.mrf.mxu0
    %1651 = vmatprep.mubr.f32.mxu0 %v134
    %1652 = vmatmul.mubr.f32.gmra.mxu0 %v133
    %v1653 = vpop.f32.mrf.mxu0
    %v1654 = vadd.f32 %v1549, %v1653
    %v1655 = vpop.f32.mrf.mxu0
    %1656 = vmatprep.mubr.f32.mxu0 %v159
    %1657 = vmatmul.mubr.f32.gmra.mxu0 %v158
    %v1658 = vpop.f32.mrf.mxu0
    %v1659 = vadd.f32 %v1554, %v1658
    %v1660 = vpop.f32.mrf.mxu0
    %1661 = vmatprep.mubr.f32.mxu0 %v184
    %1662 = vmatmul.mubr.f32.gmra.mxu0 %v183
    %v1663 = vpop.f32.mrf.mxu0
    %v1664 = vadd.f32 %v1559, %v1663
    %v1665 = vpop.f32.mrf.mxu0
    %1666 = vmatprep.mubr.f32.mxu0 %v209
    %1667 = vmatmul.mubr.f32.gmra.mxu0 %v208
    %v1668 = vpop.f32.mrf.mxu0
    %v1669 = vadd.f32 %v1564, %v1668
    %v1670 = vpop.f32.mrf.mxu0
    %1671 = vdwg.mxu0
    %1672 = vmatprep.subr.mxu0 0.0
    %1673 = vmatpush1.msra.mxu0 %v550
    %1674 = vmatprep.subr.mxu0 0.0
    %1675 = vmatpush1.msra.mxu0 %v549
    %1676 = vmatprep.subr.mxu0 0.0
    %1677 = vmatpush1.msra.mxu0 %v548
    %1678 = vmatprep.subr.mxu0 0.0
    %1679 = vmatpush1.msra.mxu0 %v547
    %1680 = vmatprep.subr.mxu0 0.0
    %1681 = vmatpush1.msra.mxu0 %v546
    %1682 = vmatprep.subr.mxu0 0.0
    %1683 = vmatpush1.msra.mxu0 %v545
    %1684 = vmatprep.subr.mxu0 0.0
    %1685 = vmatpush1.msra.mxu0 %v544
    %1686 = vmatprep.subr.mxu0 0.0
    %1687 = vmatpush1.msra.mxu0 %v543
    %1688 = vmatprep.subr.mxu0 0.0
    %1689 = vmatpush1.msra.mxu0 %v542
    %1690 = vmatprep.subr.mxu0 0.0
    %1691 = vmatpush1.msra.mxu0 %v541
    %1692 = vmatprep.subr.mxu0 0.0
    %1693 = vmatpush1.msra.mxu0 %v540
    %1694 = vmatprep.subr.mxu0 0.0
    %1695 = vmatpush1.msra.mxu0 %v539
    %1696 = vmatprep.subr.mxu0 0.0
    %1697 = vmatpush1.msra.mxu0 %v538
    %1698 = vmatprep.subr.mxu0 0.0
    %1699 = vmatpush1.msra.mxu0 %v537
    %1700 = vmatprep.subr.mxu0 0.0
    %1701 = vmatpush1.msra.mxu0 %v536
    %1702 = vmatprep.subr.mxu0 0.0
    %1703 = vmatpush1.msra.mxu0 %v535
    %1704 = vmatprep.subr.mxu0 0.0
    %1705 = vmatpush2.msra.mxu0 %v566
    %1706 = vmatprep.subr.mxu0 0.0
    %1707 = vmatpush2.msra.mxu0 %v565
    %1708 = vmatprep.subr.mxu0 0.0
    %1709 = vmatpush2.msra.mxu0 %v564
    %1710 = vmatprep.subr.mxu0 0.0
    %1711 = vmatpush2.msra.mxu0 %v563
    %1712 = vmatprep.subr.mxu0 0.0
    %1713 = vmatpush2.msra.mxu0 %v562
    %1714 = vmatprep.subr.mxu0 0.0
    %1715 = vmatpush2.msra.mxu0 %v561
    %1716 = vmatprep.subr.mxu0 0.0
    %1717 = vmatpush2.msra.mxu0 %v560
    %1718 = vmatprep.subr.mxu0 0.0
    %1719 = vmatpush2.msra.mxu0 %v559
    %1720 = vmatprep.subr.mxu0 0.0
    %1721 = vmatpush2.msra.mxu0 %v558
    %1722 = vmatprep.subr.mxu0 0.0
    %1723 = vmatpush2.msra.mxu0 %v557
    %1724 = vmatprep.subr.mxu0 0.0
    %1725 = vmatpush2.msra.mxu0 %v556
    %1726 = vmatprep.subr.mxu0 0.0
    %1727 = vmatpush2.msra.mxu0 %v555
    %1728 = vmatprep.subr.mxu0 0.0
    %1729 = vmatpush2.msra.mxu0 %v554
    %1730 = vmatprep.subr.mxu0 0.0
    %1731 = vmatpush2.msra.mxu0 %v553
    %1732 = vmatprep.subr.mxu0 0.0
    %1733 = vmatpush2.msra.mxu0 %v552
    %1734 = vmatprep.subr.mxu0 0.0
    %1735 = vmatpush2.msra.mxu0 %v551
    %1736 = vmatprep.mubr.f32.mxu0 %v36
    %1737 = vmatmul.mubr.f32.gmra.mxu0 %v35
    %v1738 = vpop.f32.mrf.mxu0
    %v1739 = vadd.f32 %v1634, %v1738
    %v1740 = vpop.f32.mrf.mxu0
    %1741 = vmatprep.mubr.f32.mxu0 %v61
    %1742 = vmatmul.mubr.f32.gmra.mxu0 %v60
    %v1743 = vpop.f32.mrf.mxu0
    %v1744 = vadd.f32 %v1639, %v1743
    %v1745 = vpop.f32.mrf.mxu0
    %1746 = vmatprep.mubr.f32.mxu0 %v86
    %1747 = vmatmul.mubr.f32.gmra.mxu0 %v85
    %v1748 = vpop.f32.mrf.mxu0
    %v1749 = vadd.f32 %v1644, %v1748
    %v1750 = vpop.f32.mrf.mxu0
    %1751 = vmatprep.mubr.f32.mxu0 %v111
    %1752 = vmatmul.mubr.f32.gmra.mxu0 %v110
    %v1753 = vpop.f32.mrf.mxu0
    %v1754 = vadd.f32 %v1649, %v1753
    %v1755 = vpop.f32.mrf.mxu0
    %1756 = vmatprep.mubr.f32.mxu0 %v136
    %1757 = vmatmul.mubr.f32.gmra.mxu0 %v135
    %v1758 = vpop.f32.mrf.mxu0
    %v1759 = vadd.f32 %v1654, %v1758
    %v1760 = vpop.f32.mrf.mxu0
    %1761 = vmatprep.mubr.f32.mxu0 %v161
    %1762 = vmatmul.mubr.f32.gmra.mxu0 %v160
    %v1763 = vpop.f32.mrf.mxu0
    %v1764 = vadd.f32 %v1659, %v1763
    %v1765 = vpop.f32.mrf.mxu0
    %1766 = vmatprep.mubr.f32.mxu0 %v186
    %1767 = vmatmul.mubr.f32.gmra.mxu0 %v185
    %v1768 = vpop.f32.mrf.mxu0
    %v1769 = vadd.f32 %v1664, %v1768
    %v1770 = vpop.f32.mrf.mxu0
    %1771 = vmatprep.mubr.f32.mxu0 %v211
    %1772 = vmatmul.mubr.f32.gmra.mxu0 %v210
    %v1773 = vpop.f32.mrf.mxu0
    %v1774 = vadd.f32 %v1669, %v1773
    %v1775 = vpop.f32.mrf.mxu0
    %1776 = vdwg.mxu0
    %1777 = vmatprep.subr.mxu0 0.0
    %1778 = vmatpush1.msra.mxu0 %v582
    %1779 = vmatprep.subr.mxu0 0.0
    %1780 = vmatpush1.msra.mxu0 %v581
    %1781 = vmatprep.subr.mxu0 0.0
    %1782 = vmatpush1.msra.mxu0 %v580
    %1783 = vmatprep.subr.mxu0 0.0
    %1784 = vmatpush1.msra.mxu0 %v579
    %1785 = vmatprep.subr.mxu0 0.0
    %1786 = vmatpush1.msra.mxu0 %v578
    %1787 = vmatprep.subr.mxu0 0.0
    %1788 = vmatpush1.msra.mxu0 %v577
    %1789 = vmatprep.subr.mxu0 0.0
    %1790 = vmatpush1.msra.mxu0 %v576
    %1791 = vmatprep.subr.mxu0 0.0
    %1792 = vmatpush1.msra.mxu0 %v575
    %1793 = vmatprep.subr.mxu0 0.0
    %1794 = vmatpush1.msra.mxu0 %v574
    %1795 = vmatprep.subr.mxu0 0.0
    %1796 = vmatpush1.msra.mxu0 %v573
    %1797 = vmatprep.subr.mxu0 0.0
    %1798 = vmatpush1.msra.mxu0 %v572
    %1799 = vmatprep.subr.mxu0 0.0
    %1800 = vmatpush1.msra.mxu0 %v571
    %1801 = vmatprep.subr.mxu0 0.0
    %1802 = vmatpush1.msra.mxu0 %v570
    %1803 = vmatprep.subr.mxu0 0.0
    %1804 = vmatpush1.msra.mxu0 %v569
    %1805 = vmatprep.subr.mxu0 0.0
    %1806 = vmatpush1.msra.mxu0 %v568
    %1807 = vmatprep.subr.mxu0 0.0
    %1808 = vmatpush1.msra.mxu0 %v567
    %1809 = vmatprep.subr.mxu0 0.0
    %1810 = vmatpush2.msra.mxu0 %v598
    %1811 = vmatprep.subr.mxu0 0.0
    %1812 = vmatpush2.msra.mxu0 %v597
    %1813 = vmatprep.subr.mxu0 0.0
    %1814 = vmatpush2.msra.mxu0 %v596
    %1815 = vmatprep.subr.mxu0 0.0
    %1816 = vmatpush2.msra.mxu0 %v595
    %1817 = vmatprep.subr.mxu0 0.0
    %1818 = vmatpush2.msra.mxu0 %v594
    %1819 = vmatprep.subr.mxu0 0.0
    %1820 = vmatpush2.msra.mxu0 %v593
    %1821 = vmatprep.subr.mxu0 0.0
    %1822 = vmatpush2.msra.mxu0 %v592
    %1823 = vmatprep.subr.mxu0 0.0
    %1824 = vmatpush2.msra.mxu0 %v591
    %1825 = vmatprep.subr.mxu0 0.0
    %1826 = vmatpush2.msra.mxu0 %v590
    %1827 = vmatprep.subr.mxu0 0.0
    %1828 = vmatpush2.msra.mxu0 %v589
    %1829 = vmatprep.subr.mxu0 0.0
    %1830 = vmatpush2.msra.mxu0 %v588
    %1831 = vmatprep.subr.mxu0 0.0
    %1832 = vmatpush2.msra.mxu0 %v587
    %1833 = vmatprep.subr.mxu0 0.0
    %1834 = vmatpush2.msra.mxu0 %v586
    %1835 = vmatprep.subr.mxu0 0.0
    %1836 = vmatpush2.msra.mxu0 %v585
    %1837 = vmatprep.subr.mxu0 0.0
    %1838 = vmatpush2.msra.mxu0 %v584
    %1839 = vmatprep.subr.mxu0 0.0
    %1840 = vmatpush2.msra.mxu0 %v583
    %1841 = vmatprep.mubr.f32.mxu0 %v38
    %1842 = vmatmul.mubr.f32.gmra.mxu0 %v37
    %v1843 = vpop.f32.mrf.mxu0
    %v1844 = vadd.f32 %v1739, %v1843
    %v1845 = vpop.f32.mrf.mxu0
    %1846 = vmatprep.mubr.f32.mxu0 %v63
    %1847 = vmatmul.mubr.f32.gmra.mxu0 %v62
    %v1848 = vpop.f32.mrf.mxu0
    %v1849 = vadd.f32 %v1744, %v1848
    %v1850 = vpop.f32.mrf.mxu0
    %1851 = vmatprep.mubr.f32.mxu0 %v88
    %1852 = vmatmul.mubr.f32.gmra.mxu0 %v87
    %v1853 = vpop.f32.mrf.mxu0
    %v1854 = vadd.f32 %v1749, %v1853
    %v1855 = vpop.f32.mrf.mxu0
    %1856 = vmatprep.mubr.f32.mxu0 %v113
    %1857 = vmatmul.mubr.f32.gmra.mxu0 %v112
    %v1858 = vpop.f32.mrf.mxu0
    %v1859 = vadd.f32 %v1754, %v1858
    %v1860 = vpop.f32.mrf.mxu0
    %1861 = vmatprep.mubr.f32.mxu0 %v138
    %1862 = vmatmul.mubr.f32.gmra.mxu0 %v137
    %v1863 = vpop.f32.mrf.mxu0
    %v1864 = vadd.f32 %v1759, %v1863
    %v1865 = vpop.f32.mrf.mxu0
    %1866 = vmatprep.mubr.f32.mxu0 %v163
    %1867 = vmatmul.mubr.f32.gmra.mxu0 %v162
    %v1868 = vpop.f32.mrf.mxu0
    %v1869 = vadd.f32 %v1764, %v1868
    %v1870 = vpop.f32.mrf.mxu0
    %1871 = vmatprep.mubr.f32.mxu0 %v188
    %1872 = vmatmul.mubr.f32.gmra.mxu0 %v187
    %v1873 = vpop.f32.mrf.mxu0
    %v1874 = vadd.f32 %v1769, %v1873
    %v1875 = vpop.f32.mrf.mxu0
    %1876 = vmatprep.mubr.f32.mxu0 %v213
    %1877 = vmatmul.mubr.f32.gmra.mxu0 %v212
    %v1878 = vpop.f32.mrf.mxu0
    %v1879 = vadd.f32 %v1774, %v1878
    %v1880 = vpop.f32.mrf.mxu0
    %1881 = vdwg.mxu0
    %1882 = vmatprep.subr.mxu0 0.0
    %1883 = vmatpush1.msra.mxu0 %v614
    %1884 = vmatprep.subr.mxu0 0.0
    %1885 = vmatpush1.msra.mxu0 %v613
    %1886 = vmatprep.subr.mxu0 0.0
    %1887 = vmatpush1.msra.mxu0 %v612
    %1888 = vmatprep.subr.mxu0 0.0
    %1889 = vmatpush1.msra.mxu0 %v611
    %1890 = vmatprep.subr.mxu0 0.0
    %1891 = vmatpush1.msra.mxu0 %v610
    %1892 = vmatprep.subr.mxu0 0.0
    %1893 = vmatpush1.msra.mxu0 %v609
    %1894 = vmatprep.subr.mxu0 0.0
    %1895 = vmatpush1.msra.mxu0 %v608
    %1896 = vmatprep.subr.mxu0 0.0
    %1897 = vmatpush1.msra.mxu0 %v607
    %1898 = vmatprep.subr.mxu0 0.0
    %1899 = vmatpush1.msra.mxu0 %v606
    %1900 = vmatprep.subr.mxu0 0.0
    %1901 = vmatpush1.msra.mxu0 %v605
    %1902 = vmatprep.subr.mxu0 0.0
    %1903 = vmatpush1.msra.mxu0 %v604
    %1904 = vmatprep.subr.mxu0 0.0
    %1905 = vmatpush1.msra.mxu0 %v603
    %1906 = vmatprep.subr.mxu0 0.0
    %1907 = vmatpush1.msra.mxu0 %v602
    %1908 = vmatprep.subr.mxu0 0.0
    %1909 = vmatpush1.msra.mxu0 %v601
    %1910 = vmatprep.subr.mxu0 0.0
    %1911 = vmatpush1.msra.mxu0 %v600
    %1912 = vmatprep.subr.mxu0 0.0
    %1913 = vmatpush1.msra.mxu0 %v599
    %1914 = vmatprep.subr.mxu0 0.0
    %1915 = vmatpush2.msra.mxu0 0.0
    %1916 = vmatprep.subr.mxu0 0.0
    %1917 = vmatpush2.msra.mxu0 0.0
    %1918 = vmatprep.subr.mxu0 0.0
    %1919 = vmatpush2.msra.mxu0 0.0
    %1920 = vmatprep.subr.mxu0 0.0
    %1921 = vmatpush2.msra.mxu0 0.0
    %1922 = vmatprep.subr.mxu0 0.0
    %1923 = vmatpush2.msra.mxu0 0.0
    %1924 = vmatprep.subr.mxu0 0.0
    %1925 = vmatpush2.msra.mxu0 0.0
    %1926 = vmatprep.subr.mxu0 0.0
    %1927 = vmatpush2.msra.mxu0 0.0
    %1928 = vmatprep.subr.mxu0 0.0
    %1929 = vmatpush2.msra.mxu0 0.0
    %1930 = vmatprep.subr.mxu0 0.0
    %1931 = vmatpush2.msra.mxu0 0.0
    %1932 = vmatprep.subr.mxu0 0.0
    %1933 = vmatpush2.msra.mxu0 0.0
    %1934 = vmatprep.subr.mxu0 0.0
    %1935 = vmatpush2.msra.mxu0 0.0
    %1936 = vmatprep.subr.mxu0 0.0
    %1937 = vmatpush2.msra.mxu0 0.0
    %1938 = vmatprep.subr.mxu0 0.0
    %1939 = vmatpush2.msra.mxu0 0.0
    %1940 = vmatprep.subr.mxu0 0.0
    %1941 = vmatpush2.msra.mxu0 0.0
    %1942 = vmatprep.subr.mxu0 0.0
    %1943 = vmatpush2.msra.mxu0 0.0
    %1944 = vmatprep.subr.mxu0 0.0
    %1945 = vmatpush2.msra.mxu0 0.0
    %1946 = vmatprep.mubr.f32.mxu0 0.0
    %1947 = vmatmul.mubr.f32.gmra.mxu0 %v39
    %v1948 = vpop.f32.mrf.mxu0
    %v1949 = vadd.f32 %v1844, %v1948
    %v1950 = vpop.f32.mrf.mxu0
    %1951 = vmatprep.mubr.f32.mxu0 0.0
    %1952 = vmatmul.mubr.f32.gmra.mxu0 %v64
    %v1953 = vpop.f32.mrf.mxu0
    %v1954 = vadd.f32 %v1849, %v1953
    %v1955 = vpop.f32.mrf.mxu0
    %1956 = vmatprep.mubr.f32.mxu0 0.0
    %1957 = vmatmul.mubr.f32.gmra.mxu0 %v89
    %v1958 = vpop.f32.mrf.mxu0
    %v1959 = vadd.f32 %v1854, %v1958
    %v1960 = vpop.f32.mrf.mxu0
    %1961 = vmatprep.mubr.f32.mxu0 0.0
    %1962 = vmatmul.mubr.f32.gmra.mxu0 %v114
    %v1963 = vpop.f32.mrf.mxu0
    %v1964 = vadd.f32 %v1859, %v1963
    %v1965 = vpop.f32.mrf.mxu0
    %1966 = vmatprep.mubr.f32.mxu0 0.0
    %1967 = vmatmul.mubr.f32.gmra.mxu0 %v139
    %v1968 = vpop.f32.mrf.mxu0
    %v1969 = vadd.f32 %v1864, %v1968
    %v1970 = vpop.f32.mrf.mxu0
    %1971 = vmatprep.mubr.f32.mxu0 0.0
    %1972 = vmatmul.mubr.f32.gmra.mxu0 %v164
    %v1973 = vpop.f32.mrf.mxu0
    %v1974 = vadd.f32 %v1869, %v1973
    %v1975 = vpop.f32.mrf.mxu0
    %1976 = vmatprep.mubr.f32.mxu0 0.0
    %1977 = vmatmul.mubr.f32.gmra.mxu0 %v189
    %v1978 = vpop.f32.mrf.mxu0
    %v1979 = vadd.f32 %v1874, %v1978
    %v1980 = vpop.f32.mrf.mxu0
    %1981 = vmatprep.mubr.f32.mxu0 0.0
    %1982 = vmatmul.mubr.f32.gmra.mxu0 %v214
    %v1983 = vpop.f32.mrf.mxu0
    %v1984 = vadd.f32 %v1879, %v1983
    %v1985 = vpop.f32.mrf.mxu0
    %1986 = vdwg.mxu0
    %vm1987 = vcmask 203776
    %1988 = vst.msk [vmem:[#allocation2] sm:$0xff] %vm1987, %v1949
    %1989 = vst.msk [vmem:[#allocation2 + $0x8] sm:$0xff] %vm1987, %v1954
    %1990 = vst.msk [vmem:[#allocation2 + $0x10] sm:$0xff] %vm1987, %v1959
    %1991 = vst.msk [vmem:[#allocation2 + $0x18] sm:$0xff] %vm1987, %v1964
    %1992 = vst.msk [vmem:[#allocation2 + $0x20] sm:$0xff] %vm1987, %v1969
    %1993 = vst.msk [vmem:[#allocation2 + $0x28] sm:$0xff] %vm1987, %v1974
    %1994 = vst.msk [vmem:[#allocation2 + $0x30] sm:$0xff] %vm1987, %v1979
    %1995 = vst.msk [vmem:[#allocation2 + $0x38] sm:$0xff] %vm1987, %v1984
    // Predicated region
    $region14: #{last_pred_pallas.1} parent=1 // pred_check
      _
    $region15: #{last_pred_pallas.1} parent=1 // pred_check_branch
      %1997 = sbr.rel (0) target = $region17
    $region16: #{last_pred_pallas.1} parent=1 // pred_region
      %s1999 = ssub.s32 1024, 1024
      %2000 = vsyncadd [#allocation3], %s1999
      %s2001 = sshll.u32 [#allocation2], 4
      %s2002 = int_to_ptr.vmem [resolvable:$true] %s2001
      %2007 = dma.vmem_to_hbm [thread:$0]  %s2002, 1024, %s3, [#allocation3], 128, 128, 8
    $region17: #{last_pred_pallas.1} parent=1 // pred_fallthru
      _
    // Predicated region
    $region18: #{last_pred_pallas.1} parent=1 // pred_check
      _
    $region19: #{last_pred_pallas.1} parent=1 // pred_check_branch
      %2009 = sbr.rel (0) target = $region21
    $region20: #{last_pred_pallas.1} parent=1 // pred_region
      %2010 = dma.done [#allocation3], 1024
    $region21: #{last_pred_pallas.1} parent=1 // pred_fallthru
      _
    %2011 = vsyncpa [#allocation3], 1

</llo_original>
